<compile_context>
chip_gen: v7x
topology: tpu7x:2x2x1
jax: 0.10.0
libtpu: 0.0.40
codegen_flags: <defaults>
</compile_context>

<pallas_src>
import math
from functools import lru_cache, partial

import jax
import jax.numpy as jnp
from jax.experimental import pallas as pl
from jax.experimental.pallas import tpu as pltpu

HEADS = 6
OUT_CHANNELS = [48, 96, 192, 384]
FEATURES = 64
DIM_S = 384      # student / projection dim (vits)
DIM_T = 1024     # teacher dim (vitl)

_VMEM_LIMIT = 48 * 1024 * 1024   # safe on v5e/v6e (128 MiB) and v7x (64 MiB)
_TM_BIG = 256                    # M tile for large matmuls (v7x-safe)


def _round_up(x, m):
    return ((x + m - 1) // m) * m


def _row_tile(mp):
    for t in (256, 128, 64, 32, 16, 8):
        if mp % t == 0:
            return t
    return mp


# ----------------------------------------------------------------------------
# Generic matmul kernel (bf16 MXU, f32 accumulation)
# ----------------------------------------------------------------------------

def _mm_kernel(x_ref, w_ref, b_ref, o_ref, *, act):
    acc = jnp.dot(x_ref[...], w_ref[...], preferred_element_type=jnp.float32)
    acc = acc + b_ref[...]
    if act == "relu":
        acc = jnp.maximum(acc, 0.0)
    elif act == "gelu":
        # TODO(synk): torch nn.GELU is exact-erf; tanh approximation used here.
        c = math.sqrt(2.0 / math.pi)
        acc = 0.5 * acc * (1.0 + jnp.tanh(c * (acc + 0.044715 * acc * acc * acc)))
    o_ref[...] = acc


def matmul(x, w, b=None, act="none"):
    """y = act(x @ w + b).  x:(M,K), w:(K,N), b:(N,) or None.  bf16 MXU inputs."""
    M, K = x.shape
    K2, N = w.shape
    assert K == K2
    if b is None:
        b = jnp.zeros((N,), jnp.float32)
    b2 = b.reshape(1, N).astype(jnp.float32)
    xb = x.astype(jnp.bfloat16)
    wb = w.astype(jnp.bfloat16)
    if M <= 512:                          # tiny M: single block, 16-row padding only
        TM = _round_up(M, 16)
        Mp = TM
    else:
        TM = _TM_BIG
        Mp = _round_up(M, TM)
    xp = xb if Mp == M else jnp.pad(xb, ((0, Mp - M), (0, 0)))
    out = pl.pallas_call(
        partial(_mm_kernel, act=act),
        out_shape=jax.ShapeDtypeStruct((Mp, N), jnp.float32),
        grid=(Mp // TM,),
        in_specs=[
            pl.BlockSpec((TM, K), lambda i: (i, 0)),
            pl.BlockSpec((K, N), lambda i: (0, 0)),
            pl.BlockSpec((1, N), lambda i: (0, 0)),
        ],
        out_specs=pl.BlockSpec((TM, N), lambda i: (i, 0)),
        compiler_params=pltpu.CompilerParams(
            dimension_semantics=("parallel",),
            vmem_limit_bytes=_VMEM_LIMIT),
    )(xp, wb, b2)
    return out[:M]


def linear(x, p, act="none"):
    shp = x.shape
    y = matmul(x.reshape(-1, shp[-1]), p["w"], p["b"], act=act)
    return y.reshape(shp[:-1] + (p["w"].shape[1],))


# ----------------------------------------------------------------------------
# LayerNorm (gridded over row tiles)
# ----------------------------------------------------------------------------

def _ln_kernel(x_ref, w_ref, b_ref, o_ref):
    x = x_ref[...]
    mu = jnp.mean(x, axis=-1, keepdims=True)
    xc = x - mu
    var = jnp.mean(xc * xc, axis=-1, keepdims=True)
    o_ref[...] = xc * jax.lax.rsqrt(var + 1e-6) * w_ref[...] + b_ref[...]


def layernorm2d(x2d, w, b):
    M, D = x2d.shape
    Mp = _round_up(M, 8)
    TR = _row_tile(Mp)
    xp = x2d if Mp == M else jnp.pad(x2d, ((0, Mp - M), (0, 0)))
    out = pl.pallas_call(
        _ln_kernel,
        out_shape=jax.ShapeDtypeStruct((Mp, D), jnp.float32),
        grid=(Mp // TR,),
        in_specs=[
            pl.BlockSpec((TR, D), lambda i: (i, 0)),
            pl.BlockSpec((1, D), lambda i: (0, 0)),
            pl.BlockSpec((1, D), lambda i: (0, 0)),
        ],
        out_specs=pl.BlockSpec((TR, D), lambda i: (i, 0)),
        compiler_params=pltpu.CompilerParams(dimension_semantics=("parallel",)),
    )(xp.astype(jnp.float32), w.reshape(1, D).astype(jnp.float32),
      b.reshape(1, D).astype(jnp.float32))
    return out[:M]


def layernorm_nd(x, p):
    shp = x.shape
    return layernorm2d(x.reshape(-1, shp[-1]), p["w"], p["b"]).reshape(shp)


# ----------------------------------------------------------------------------
# Multi-head attention core: all heads of one batch element per grid step
# ----------------------------------------------------------------------------

def _mha_kernel(q_ref, k_ref, v_ref, o_ref, *, scale):
    q = q_ref[0]                       # (H, M, K)   bf16
    k = k_ref[0]                       # (H, L, K)   bf16
    v = v_ref[0]                       # (H, L, Dv)  bf16
    s = jax.lax.dot_general(q, k, (((2,), (2,)), ((0,), (0,))),
                            preferred_element_type=jnp.float32) * scale
    s = s - jnp.max(s, axis=-1, keepdims=True)
    p = jnp.exp(s)
    p = p * pl.reciprocal(jnp.sum(p, axis=-1, keepdims=True), approx=True)
    o_ref[0] = jax.lax.dot_general(p.astype(v.dtype), v,
                                   (((2,), (1,)), ((0,), (0,))),
                                   preferred_element_type=jnp.float32)


def mha(q, k, v, scale):
    """q:(B,H,M,K), k:(B,H,L,K), v:(B,H,L,Dv) -> (B,H,M,Dv), softmax over L."""
    B, Hh, M, K = q.shape
    Dv = v.shape[3]
    qspec = pl.BlockSpec((1,) + q.shape[1:], lambda i: (i, 0, 0, 0))
    kspec = pl.BlockSpec((1,) + k.shape[1:], lambda i: (i, 0, 0, 0))
    vspec = pl.BlockSpec((1,) + v.shape[1:], lambda i: (i, 0, 0, 0))
    return pl.pallas_call(
        partial(_mha_kernel, scale=scale),
        out_shape=jax.ShapeDtypeStruct((B, Hh, M, Dv), jnp.float32),
        grid=(B,),
        in_specs=[qspec, kspec, vspec],
        out_specs=pl.BlockSpec((1, Hh, M, Dv), lambda i: (i, 0, 0, 0)),
        compiler_params=pltpu.CompilerParams(
            dimension_semantics=("parallel",),
            vmem_limit_bytes=_VMEM_LIMIT),
    )(q.astype(jnp.bfloat16), k.astype(jnp.bfloat16), v.astype(jnp.bfloat16))


# TODO(synk): head split/merge transposes below still run as XLA ops; a
# layout-aware BlockSpec (heads on a grid axis) would remove this HBM traffic.
# TODO(synk): flash-style KV streaming not needed at these token counts; add it
# for large images (N ~ 1369) on v7x.

def _split_heads_tokens(t):
    B, N, D = t.shape
    dh = D // HEADS
    return t.reshape(B, N, HEADS, dh).transpose(0, 2, 1, 3)       # (B, H, N, dh)


def _split_heads_channels(t):
    B, N, D = t.shape
    dh = D // HEADS
    return t.reshape(B, N, HEADS, dh).transpose(0, 2, 3, 1)       # (B, H, dh, N)


def _split_fused_tokens(t, parts):
    B, N, PD = t.shape
    dh = PD // parts // HEADS
    t = t.reshape(B, N, parts, HEADS, dh).transpose(2, 0, 3, 1, 4)
    return tuple(t[i] for i in range(parts))                      # each (B, H, N, dh)


def _split_fused_channels(t, parts):
    B, N, PD = t.shape
    dh = PD // parts // HEADS
    t = t.reshape(B, N, parts, HEADS, dh).transpose(2, 0, 3, 4, 1)
    return tuple(t[i] for i in range(parts))                      # each (B, H, dh, N)


def token_attention(xq, xkv, p, fused_self=False):
    B, Nq, Dq = xq.shape
    dh = Dq // HEADS
    if fused_self:
        q, k, v = _split_fused_tokens(linear(xq, p["qkv"]), 3)
    else:
        q = _split_heads_tokens(linear(xq, p["q"]))
        k, v = _split_fused_tokens(linear(xkv, p["kv"]), 2)
    o = mha(q, k, v, scale=1.0 / math.sqrt(dh))                    # (B, H, Nq, dh)
    o = o.transpose(0, 2, 1, 3).reshape(B, Nq, Dq)
    return linear(o, p["o"])


def channel_attention(xq, xkv, p):
    # channel-based cross attention: heads split the channel axis; attention is
    # computed between channels with tokens as the contraction axis.
    B, N, Dq = xq.shape
    q = _split_heads_channels(linear(xq, p["q"]))
    k, v = _split_fused_channels(linear(xkv, p["kv"]), 2)
    o = mha(q, k, v, scale=1.0 / math.sqrt(N))                     # (B, H, dh, N)
    o = o.transpose(0, 3, 1, 2).reshape(B, N, Dq)
    return linear(o, p["o"])


def mlp(x, p):
    h = linear(x, p["fc1"], act="gelu")
    return linear(h, p["fc2"])


def channel_cross_block(xs, xt, p):
    a = channel_attention(layernorm_nd(xs, p["ln_q"]), layernorm_nd(xt, p["ln_kv"]), p)
    x = xs + a
    return x + mlp(layernorm_nd(x, p["ln2"]), p)


def cross_block(xs, xkv, p):
    a = token_attention(layernorm_nd(xs, p["ln_q"]), layernorm_nd(xkv, p["ln_kv"]), p)
    x = xs + a
    return x + mlp(layernorm_nd(x, p["ln2"]), p)


def self_block(x, p):
    xn = layernorm_nd(x, p["ln_q"])
    x = x + token_attention(xn, xn, p, fused_self=True)
    return x + mlp(layernorm_nd(x, p["ln2"]), p)


# ----------------------------------------------------------------------------
# 3x3 stride-1 conv fully inside a Pallas kernel (no im2col materialization)
# ----------------------------------------------------------------------------

def _conv3x3_kernel(*refs, act, pre_relu, has_proj):
    if has_proj:
        x0, x1, x2, w_ref, b_ref, pw_ref, pb_ref, o_ref = refs
    else:
        x0, x1, x2, w_ref, b_ref, o_ref = refs
    rows = (x0[0, 0], x1[0, 0], x2[0, 0])          # each (Wp, Cin) f32
    Wo = o_ref.shape[2]
    Cout = w_ref.shape[-1]
    acc = jnp.zeros((Wo, Cout), jnp.float32) + b_ref[...]
    for di in range(3):
        r = rows[di]
        if pre_relu:
            r = jnp.maximum(r, 0.0)
        for dj in range(3):
            patch = r[dj:dj + Wo, :].astype(jnp.bfloat16)
            acc = acc + jnp.dot(patch, w_ref[di, dj],
                                preferred_element_type=jnp.float32)
    if act == "relu":
        acc = jnp.maximum(acc, 0.0)
    if has_proj:                                    # fused relu(1x1 conv) tail
        acc = jnp.dot(acc.astype(jnp.bfloat16), pw_ref[...],
                      preferred_element_type=jnp.float32) + pb_ref[...]
        acc = jnp.maximum(acc, 0.0)
    o_ref[0, 0] = acc


def conv3x3(x, w, b=None, act="none", pre_relu=False, proj=None):
    """3x3 / stride 1 / padding 1 conv on NHWC.  Grid over (batch, output-row);
    each step accumulates 9 shifted (W, Cin) @ (Cin, Cout) MXU dots in VMEM.
    `proj` optionally fuses a trailing relu(1x1 conv) projection.
    TODO(synk): row-tile (with halo) instead of single rows for very large images."""
    B, H, W, Cin = x.shape
    Cout = w.shape[-1]
    if b is None:
        b = jnp.zeros((Cout,), jnp.float32)
    xp = jnp.pad(x.astype(jnp.float32), ((0, 0), (1, 1), (1, 1), (0, 0)))
    Wp = W + 2
    wb = w.astype(jnp.bfloat16)
    b2 = b.reshape(1, Cout).astype(jnp.float32)

    def row_spec(di):
        return pl.BlockSpec((1, 1, Wp, Cin), lambda bb, i, d=di: (bb, i + d, 0, 0))

    in_specs = [row_spec(0), row_spec(1), row_spec(2),
                pl.BlockSpec((3, 3, Cin, Cout), lambda bb, i: (0, 0, 0, 0)),
                pl.BlockSpec((1, Cout), lambda bb, i: (0, 0))]
    args = [xp, xp, xp, wb, b2]
    Cfinal = Cout
    if proj is not None:
        Cfinal = proj["w"].shape[-1]
        in_specs += [pl.BlockSpec((Cout, Cfinal), lambda bb, i: (0, 0)),
                     pl.BlockSpec((1, Cfinal), lambda bb, i: (0, 0))]
        args += [proj["w"].astype(jnp.bfloat16),
                 proj["b"].reshape(1, Cfinal).astype(jnp.float32)]
    return pl.pallas_call(
        partial(_conv3x3_kernel, act=act, pre_relu=pre_relu,
                has_proj=proj is not None),
        out_shape=jax.ShapeDtypeStruct((B, H, W, Cfinal), jnp.float32),
        grid=(B, H),
        in_specs=in_specs,
        out_specs=pl.BlockSpec((1, 1, W, Cfinal), lambda bb, i: (bb, i, 0, 0)),
        compiler_params=pltpu.CompilerParams(
            dimension_semantics=("parallel", "parallel"),
            vmem_limit_bytes=_VMEM_LIMIT),
    )(*args)


def conv2d_im2col(x, w, b=None, stride=1, padding=1, act="none"):
    """Generic conv fallback (used only for the single 3x3 stride-2 layer)."""
    B, H, W, Cin = x.shape
    kh, kw, _, Cout = w.shape
    xp = jnp.pad(x, ((0, 0), (padding, padding), (padding, padding), (0, 0)))
    Ho = (H + 2 * padding - kh) // stride + 1
    Wo = (W + 2 * padding - kw) // stride + 1
    cols = []
    for di in range(kh):
        for dj in range(kw):
            cols.append(xp[:, di:di + stride * Ho:stride, dj:dj + stride * Wo:stride, :])
    cols = jnp.concatenate(cols, axis=-1).reshape(B * Ho * Wo, kh * kw * Cin)
    y = matmul(cols, w.reshape(kh * kw * Cin, Cout), b, act=act)
    return y.reshape(B, Ho, Wo, Cout)


def conv_transpose_same_stride_nhwc(x, w, b, k):
    """ConvTranspose2d with kernel_size == stride, padding 0.  w: (Cin,k,k,Cout)."""
    B, H, W, Cin = x.shape
    Cout = w.shape[-1]
    y = matmul(x.reshape(B * H * W, Cin), w.reshape(Cin, k * k * Cout), jnp.tile(b, k * k))
    y = y.reshape(B, H, W, k, k, Cout).transpose(0, 1, 3, 2, 4, 5)
    return y.reshape(B, H * k, W * k, Cout)


# ---- bilinear resize (align_corners=True) as matmuls, cached interp matrices --

@lru_cache(maxsize=None)
def _interp_matrix_t(in_size, out_size):
    if out_size == 1:
        return jnp.zeros((1, in_size), jnp.float32).at[0, 0].set(1.0).T
    idx = jnp.arange(out_size, dtype=jnp.float32)
    src = idx * (in_size - 1) / (out_size - 1)          # align_corners=True
    i0 = jnp.clip(jnp.floor(src).astype(jnp.int32), 0, in_size - 1)
    i1 = jnp.clip(i0 + 1, 0, in_size - 1)
    w1 = src - i0.astype(jnp.float32)
    m = jnp.zeros((out_size, in_size), jnp.float32)
    r = jnp.arange(out_size)
    m = m.at[r, i0].add(1.0 - w1)
    m = m.at[r, i1].add(w1)
    return m.T


def _resize_last_axis(t2d, in_size, out_size):
    if in_size == out_size:
        return t2d
    if in_size == 1:
        return jnp.repeat(t2d, out_size, axis=1)
    return matmul(t2d, _interp_matrix_t(in_size, out_size))


def bilinear_resize_nhwc(x, out_h, out_w):
    B, H, W, C = x.shape
    if (out_h, out_w) == (H, W):                        # identity resize: skip
        return x
    t = x.transpose(0, 1, 3, 2).reshape(B * H * C, W)
    t = _resize_last_axis(t, W, out_w)
    t = t.reshape(B, H, C, out_w).transpose(0, 3, 2, 1).reshape(B * out_w * C, H)
    t = _resize_last_axis(t, H, out_h)
    return t.reshape(B, out_w, C, out_h).transpose(0, 3, 1, 2)


# ---- fused ReLU + global min/max normalization (two gridded passes) ----------

def _minmax_kernel(x_ref, mn_ref, mx_ref):
    x = jnp.maximum(x_ref[...], 0.0)
    mn = jnp.min(jnp.min(x, axis=1, keepdims=True), axis=0, keepdims=True)
    mx = jnp.max(jnp.max(x, axis=1, keepdims=True), axis=0, keepdims=True)

    @pl.when(pl.program_id(0) == 0)
    def _():
        mn_ref[...] = mn
        mx_ref[...] = mx

    @pl.when(pl.program_id(0) != 0)
    def _():
        mn_ref[...] = jnp.minimum(mn_ref[...], mn)
        mx_ref[...] = jnp.maximum(mx_ref[...], mx)


def _normalize_kernel(x_ref, mn_ref, mx_ref, o_ref):
    x = jnp.maximum(x_ref[...], 0.0)
    mn = mn_ref[...]
    mx = mx_ref[...]
    o_ref[...] = (x - mn) / (mx - mn + 1e-6)


def relu_minmax_norm(x2d):
    M, W = x2d.shape
    Mp = _round_up(M, 8)
    TR = _row_tile(Mp)
    xp = x2d if Mp == M else jnp.pad(x2d, ((0, Mp - M), (0, 0)), mode="edge")
    grid = (Mp // TR,)
    scal = jax.ShapeDtypeStruct((1, 1), jnp.float32)
    mn, mx = pl.pallas_call(
        _minmax_kernel,
        out_shape=(scal, scal),
        grid=grid,
        in_specs=[pl.BlockSpec((TR, W), lambda i: (i, 0))],
        out_specs=(pl.BlockSpec((1, 1), lambda i: (0, 0)),
                   pl.BlockSpec((1, 1), lambda i: (0, 0))),
        compiler_params=pltpu.CompilerParams(dimension_semantics=("arbitrary",)),
    )(xp)
    out = pl.pallas_call(
        _normalize_kernel,
        out_shape=jax.ShapeDtypeStruct((Mp, W), jnp.float32),
        grid=grid,
        in_specs=[pl.BlockSpec((TR, W), lambda i: (i, 0)),
                  pl.BlockSpec((1, 1), lambda i: (0, 0)),
                  pl.BlockSpec((1, 1), lambda i: (0, 0))],
        out_specs=pl.BlockSpec((TR, W), lambda i: (i, 0)),
        compiler_params=pltpu.CompilerParams(dimension_semantics=("parallel",)),
    )(xp, mn, mx)
    return out[:M]


# ----------------------------------------------------------------------------
# DPT head
# ----------------------------------------------------------------------------

def residual_conv_unit(x, p):
    # relu -> conv1 -> relu -> conv2 -> +x, with activations fused into conv kernels
    out = conv3x3(x, p["c1w"], p["c1b"], act="relu", pre_relu=True)
    out = conv3x3(out, p["c2w"], p["c2b"])
    return out + x


def fusion_block(x, res, p, size):
    if res is not None:
        x = x + residual_conv_unit(res, p["rcu1"])
    x = residual_conv_unit(x, p["rcu2"])
    if size is None:
        size = (x.shape[1] * 2, x.shape[2] * 2)          # scale_factor=2
    x = bilinear_resize_nhwc(x, size[0], size[1])
    B, Ho, Wo, C = x.shape
    x = matmul(x.reshape(-1, C), p["ocw"], p["ocb"]).reshape(B, Ho, Wo, -1)
    return x


def dpt_head_forward(feats, patch_h, patch_w, hp):
    layers = []
    for i, f in enumerate(feats):
        B, N, D = f.shape
        x = f.reshape(B, patch_h, patch_w, D)            # NHWC view of tokens
        x = linear(x, hp["proj"][i])                     # 1x1 conv projection
        if i == 0:
            x = conv_transpose_same_stride_nhwc(x, hp["rs0"]["w"], hp["rs0"]["b"], 4)
        elif i == 1:
            x = conv_transpose_same_stride_nhwc(x, hp["rs1"]["w"], hp["rs1"]["b"], 2)
        elif i == 3:
            x = conv2d_im2col(x, hp["rs3"]["w"], hp["rs3"]["b"], stride=2, padding=1)
        layers.append(x)
    l1, l2, l3, l4 = layers
    l1rn = conv3x3(l1, hp["rn"][0], None)
    l2rn = conv3x3(l2, hp["rn"][1], None)
    l3rn = conv3x3(l3, hp["rn"][2], None)
    l4rn = conv3x3(l4, hp["rn"][3], None)

    p4 = fusion_block(l4rn, None, hp["refine"][3], size=l3rn.shape[1:3])
    p3 = fusion_block(p4, l3rn, hp["refine"][2], size=l2rn.shape[1:3])
    p2 = fusion_block(p3, l2rn, hp["refine"][1], size=l1rn.shape[1:3])
    p1 = fusion_block(p2, l1rn, hp["refine"][0], size=None)

    out = conv3x3(p1, hp["oc1w"], hp["oc1b"])                        # output_conv1
    out = bilinear_resize_nhwc(out, patch_h * 14, patch_w * 14)
    # output_conv2: 3x3 conv + relu, fused with the final relu(1x1 conv 32->1)
    out = conv3x3(out, hp["oc2aw"], hp["oc2ab"], act="relu",
                  proj={"w": hp["oc2bw"], "b": hp["oc2bb"]})
    return out                                                        # (B, 14ph, 14pw, 1)


# ----------------------------------------------------------------------------
# Full model forward
# ----------------------------------------------------------------------------

def _encoder_stub(x_nchw, patch_h, patch_w, enc):
    # TODO(synk): the torch.hub DINOv2 teacher/student backbones are external
    # pretrained models; replaced by a deterministic patch-embedding stub that
    # produces 4 intermediate (B, N, C) feature maps for each encoder.
    B, C, H, W = x_nchw.shape
    x = x_nchw.transpose(0, 2, 3, 1)
    patches = x.reshape(B, patch_h, 14, patch_w, 14, C).transpose(0, 1, 3, 2, 4, 5)
    patches = patches.reshape(B, patch_h * patch_w, 14 * 14 * C)
    teacher = [linear(patches, enc["teacher"][l]) for l in range(4)]
    student = [linear(patches, enc["student"][l]) for l in range(4)]
    return teacher, student


def asymkd_compress_forward(x, params):
    B, _, H, W = x.shape
    patch_h, patch_w = H // 14, W // 14
    teacher_feats, student_feats = _encoder_stub(x, patch_h, patch_w, params["enc"])

    proj_feature = []
    for l in range(4):
        ch = channel_cross_block(student_feats[l], teacher_feats[l], params["channel"][l])
        feat = cross_block(student_feats[l], ch, params["cross"][l])
        feat = self_block(feat, params["self"][l])
        proj_feature.append(feat)

    depth = dpt_head_forward(proj_feature, patch_h, patch_w, params["head"])  # NHWC, C=1
    depth = bilinear_resize_nhwc(depth, H, W)        # identity when 14*ph == H (skipped)
    d2 = relu_minmax_norm(depth.reshape(B * H, W))   # fused F.relu + NormalizeLayer
    return d2.reshape(B, 1, H, W), proj_feature


# ----------------------------------------------------------------------------
# Deterministic synthetic parameters
# ----------------------------------------------------------------------------

def _keygen(key):
    box = [key]

    def gen():
        box[0], sub = jax.random.split(box[0])
        return sub
    return gen


def _lin_p(gen, din, dout, scale=0.02):
    return {"w": scale * jax.random.normal(gen(), (din, dout), jnp.float32),
            "b": scale * jax.random.normal(gen(), (dout,), jnp.float32)}


def _ln_p(d):
    return {"w": jnp.ones((d,), jnp.float32), "b": jnp.zeros((d,), jnp.float32)}


def _attn_block_p(gen, dq, dkv, mlp_ratio=4):
    p = {"ln_q": _ln_p(dq), "ln_kv": _ln_p(dkv),
         "q": _lin_p(gen, dq, dq), "k": _lin_p(gen, dkv, dq), "v": _lin_p(gen, dkv, dq),
         "o": _lin_p(gen, dq, dq), "ln2": _ln_p(dq),
         "fc1": _lin_p(gen, dq, dq * mlp_ratio), "fc2": _lin_p(gen, dq * mlp_ratio, dq)}
    # fused projection weights (single matmul at runtime)
    p["kv"] = {"w": jnp.concatenate([p["k"]["w"], p["v"]["w"]], axis=1),
               "b": jnp.concatenate([p["k"]["b"], p["v"]["b"]], axis=0)}
    if dq == dkv:
        p["qkv"] = {"w": jnp.concatenate([p["q"]["w"], p["k"]["w"], p["v"]["w"]], axis=1),
                    "b": jnp.concatenate([p["q"]["b"], p["k"]["b"], p["v"]["b"]], axis=0)}
    return p


def _conv_p(gen, kh, kw, cin, cout, bias=True, scale=0.02):
    p = {"w": scale * jax.random.normal(gen(), (kh, kw, cin, cout), jnp.float32)}
    p["b"] = (scale * jax.random.normal(gen(), (cout,), jnp.float32)) if bias else None
    return p


def build_params(key):
    gen = _keygen(key)
    enc = {"teacher": [_lin_p(gen, 14 * 14 * 3, DIM_T) for _ in range(4)],
           "student": [_lin_p(gen, 14 * 14 * 3, DIM_S) for _ in range(4)]}
    channel = [_attn_block_p(gen, DIM_S, DIM_T) for _ in range(4)]
    cross = [_attn_block_p(gen, DIM_S, DIM_S) for _ in range(4)]
    selfb = [_attn_block_p(gen, DIM_S, DIM_S) for _ in range(4)]

    def rcu():
        a = _conv_p(gen, 3, 3, FEATURES, FEATURES)
        b = _conv_p(gen, 3, 3, FEATURES, FEATURES)
        return {"c1w": a["w"], "c1b": a["b"], "c2w": b["w"], "c2b": b["b"]}

    def fusion():
        o = _lin_p(gen, FEATURES, FEATURES)
        return {"rcu1": rcu(), "rcu2": rcu(), "ocw": o["w"], "ocb": o["b"]}

    oc = OUT_CHANNELS
    head = {
        "proj": [_lin_p(gen, DIM_S, c) for c in oc],
        "rs0": {"w": 0.02 * jax.random.normal(gen(), (oc[0], 4, 4, oc[0]), jnp.float32),
                "b": 0.02 * jax.random.normal(gen(), (oc[0],), jnp.float32)},
        "rs1": {"w": 0.02 * jax.random.normal(gen(), (oc[1], 2, 2, oc[1]), jnp.float32),
                "b": 0.02 * jax.random.normal(gen(), (oc[1],), jnp.float32)},
        "rs3": _conv_p(gen, 3, 3, oc[3], oc[3]),
        "rn": [_conv_p(gen, 3, 3, c, FEATURES, bias=False)["w"] for c in oc],
        "refine": [fusion() for _ in range(4)],   # index 0..3 == refinenet1..4
    }
    oc1 = _conv_p(gen, 3, 3, FEATURES, FEATURES // 2)
    oc2a = _conv_p(gen, 3, 3, FEATURES // 2, 32)
    oc2b = _lin_p(gen, 32, 1)
    head.update({"oc1w": oc1["w"], "oc1b": oc1["b"],
                 "oc2aw": oc2a["w"], "oc2ab": oc2a["b"],
                 "oc2bw": oc2b["w"], "oc2bb": oc2b["b"]})
    return {"enc": enc, "channel": channel, "cross": cross, "self": selfb, "head": head}


# ----------------------------------------------------------------------------

if __name__ == "__main__":
    B, H, W = 2, 28, 28                       # small: patch grid 2x2, N=4 tokens
    x = jax.random.normal(jax.random.PRNGKey(0), (B, 3, H, W), jnp.float32)
    params = build_params(jax.random.PRNGKey(42))

    depth, proj_feats = asymkd_compress_forward(x, params)
    jax.block_until_ready(depth)
    for f in proj_feats:
        jax.block_until_ready(f)

    assert depth.shape == (B, 1, H, W)
    assert all(f.shape == (B, (H // 14) * (W // 14), DIM_S) for f in proj_feats)
    assert bool(jnp.all(jnp.isfinite(depth)))
    assert bool(jnp.all(depth >= 0.0)) and bool(jnp.all(depth <= 1.0 + 1e-5))
    print("KERNEL_OK")
</pallas_src>

<mosaic_0001>
module attributes {stable_mosaic.version = 11 : i64} {
  func.func @_mm_kernel(%arg0: i32, %arg1: memref<16x588xbf16, #tpu.memory_space<vmem>>, %arg2: memref<588x1024xbf16, #tpu.memory_space<vmem>>, %arg3: memref<1x1024xf32, #tpu.memory_space<vmem>>, %arg4: memref<16x1024xf32, #tpu.memory_space<vmem>>) attributes {dimension_semantics = [#tpu.dimension_semantics<parallel>], iteration_bounds = array<i64: 1>, scalar_prefetch = 0 : i64, scratch_operands = 0 : i64, tpu.core_type = #tpu.core_type<tc>, window_params = [{transform_indices = @transform_0, window_bounds = array<i64: 16, 588>}, {pipeline_mode = #tpu.pipeline_mode<synchronous>, transform_indices = @transform_1, window_bounds = array<i64: 588, 1024>}, {pipeline_mode = #tpu.pipeline_mode<synchronous>, transform_indices = @transform_2, window_bounds = array<i64: 1, 1024>}, {transform_indices = @transform_3, window_bounds = array<i64: 16, 1024>}]} {
    %c0 = arith.constant 0 : index
    %c0_0 = arith.constant 0 : index
    %0 = vector.load %arg1[%c0, %c0_0] : memref<16x588xbf16, #tpu.memory_space<vmem>>, vector<16x588xbf16>
    %c0_1 = arith.constant 0 : index
    %c0_2 = arith.constant 0 : index
    %1 = vector.load %arg2[%c0_1, %c0_2] : memref<588x1024xbf16, #tpu.memory_space<vmem>>, vector<588x1024xbf16>
    %cst = arith.constant dense<0.000000e+00> : vector<16x1024xf32>
    %2 = tpu.matmul %0, %1, %cst {dimension_numbers = #tpu.dot_dimension_numbers<[1], [0], [0], [1], [0, 0, 1, 1], [], []>} : vector<16x588xbf16>, vector<588x1024xbf16>, vector<16x1024xf32> -> vector<16x1024xf32>
    %c0_3 = arith.constant 0 : index
    %c0_4 = arith.constant 0 : index
    %3 = vector.load %arg3[%c0_3, %c0_4] : memref<1x1024xf32, #tpu.memory_space<vmem>>, vector<1x1024xf32>
    %4 = vector.broadcast %3 : vector<1x1024xf32> to vector<16x1024xf32>
    %5 = arith.addf %2, %4 : vector<16x1024xf32>
    %c0_5 = arith.constant 0 : index
    %c0_6 = arith.constant 0 : index
    %6 = vector.load %arg4[%c0_5, %c0_6] : memref<16x1024xf32, #tpu.memory_space<vmem>>, vector<16x1024xf32>
    tpu.vector_store %arg4[%c0_5, %c0_6], %5 {strides = array<i32>} : memref<16x1024xf32, #tpu.memory_space<vmem>>, vector<16x1024xf32>,
    return
  }
  func.func @transform_0(%arg0: i32) -> (i32, i32) {
    %c0_i32 = arith.constant 0 : i32
    %c0_i32_0 = arith.constant 0 : i32
    return %arg0, %c0_i32 : i32, i32
  }
  func.func @transform_1(%arg0: i32) -> (i32, i32) {
    %c0_i32 = arith.constant 0 : i32
    %c0_i32_0 = arith.constant 0 : i32
    %c0_i32_1 = arith.constant 0 : i32
    return %c0_i32, %c0_i32_0 : i32, i32
  }
  func.func @transform_2(%arg0: i32) -> (i32, i32) {
    %c0_i32 = arith.constant 0 : i32
    %c0_i32_0 = arith.constant 0 : i32
    %c0_i32_1 = arith.constant 0 : i32
    return %c0_i32, %c0_i32_0 : i32, i32
  }
  func.func @transform_3(%arg0: i32) -> (i32, i32) {
    %c0_i32 = arith.constant 0 : i32
    %c0_i32_0 = arith.constant 0 : i32
    return %arg0, %c0_i32 : i32, i32
  }
}

</mosaic_0001>

<llo_original>
// kernel: tpu_custom_call.1
$region0: #{tpu_custom_call.1}
  #allocation0 [shape = 'u32[]', space=smem, size = 0x4, offset = 0x4, fixed_abs, tag = 'smem constant byte address 0x4 - core index']
  #allocation1 [shape = 'u32[144,128]{1,0:T(1,128)}', space=vmem, size = 0x12000, scoped, tag = 'internal scratch']
  %s0 = inlined_call_operand.hbm [shape: bf16[16,588], index: 0, kind: input, shape index: {}]
  %s1 = inlined_call_operand.hbm [shape: bf16[588,1024], index: 1, kind: input, shape index: {}]
  %s2 = inlined_call_operand.hbm [shape: f32[1,1024], index: 2, kind: input, shape index: {}]
  %s3 = inlined_call_operand.hbm [shape: f32[16,1024], index: 3, kind: output, shape index: {}]
  %s4 = sld [smem:[#allocation0]]
  $region34: #{tpu_custom_call.1} parent=0
    _
  %s6 = ssub.s32 1, %s4
  %s7 = scalar_select 0, %s6, %s4
  $region1: #{tpu_custom_call.1} parent=0
    #allocation2 [shape = 'u8[20480]{0}', space=vmem, size = 0x5000, scoped, tag = 'input window, operand 0, single buffered']
    #allocation3 [shape = 's32[1]{0}', space=sflag, size = 0x4, scoped, tag = 'scoped memory for tpu_custom_call.1']
    #allocation4 [shape = 's32[1]{0}', space=sflag, size = 0x4, scoped, tag = 'scoped memory for tpu_custom_call.1']
    #allocation5 [shape = 'u8[1212416]{0}', space=vmem, size = 0x128000, scoped, tag = 'input window, operand 1, single buffered']
    #allocation6 [shape = 's32[1]{0}', space=sflag, size = 0x4, scoped, tag = 'scoped memory for tpu_custom_call.1']
    #allocation7 [shape = 'u8[4096]{0}', space=vmem, size = 0x1000, scoped, tag = 'input window, operand 2, single buffered']
    #allocation8 [shape = 'u8[65536]{0}', space=vmem, size = 0x10000, scoped, tag = 'output window, operand 0, single buffered']
    %8 = vsyncpa [#allocation3], 0
    %9 = vsyncpa [#allocation6], 0
    %10 = vsyncpa [#allocation4], 0
    // Predicated region
    $region2: #{tpu_custom_call.1} parent=1 // pred_check
      _
    $region3: #{tpu_custom_call.1} parent=1 // pred_check_branch
      %12 = sbr.rel (0) target = $region5
    $region4: #{tpu_custom_call.1} parent=1 // pred_region
      %s14 = ssub.s32 640, 640
      %15 = vsyncadd [#allocation3], %s14
      %s16 = sshll.u32 [#allocation2], 4
      %s17 = int_to_ptr.vmem [resolvable:$true] %s16
      %22 = dma.hbm_to_vmem [thread:$0]  %s0, 640, %s17, [#allocation3], 320, 320, 20
    $region5: #{tpu_custom_call.1} parent=1 // pred_fallthru
      _
    // Predicated region
    $region6: #{tpu_custom_call.1} parent=1 // pred_check
      _
    $region7: #{tpu_custom_call.1} parent=1 // pred_check_branch
      %24 = sbr.rel (0) target = $region9
    $region8: #{tpu_custom_call.1} parent=1 // pred_region
      %s26 = ssub.s32 37888, 37888
      %27 = vsyncadd [#allocation6], %s26
      %s28 = sshll.u32 [#allocation5], 4
      %s29 = int_to_ptr.vmem [resolvable:$true] %s28
      %34 = dma.hbm_to_vmem [thread:$0]  %s1, 37888, %s29, [#allocation6], 512, 512, 32
    $region9: #{tpu_custom_call.1} parent=1 // pred_fallthru
      _
    // Predicated region
    $region10: #{tpu_custom_call.1} parent=1 // pred_check
      _
    $region11: #{tpu_custom_call.1} parent=1 // pred_check_branch
      %36 = sbr.rel (0) target = $region13
    $region12: #{tpu_custom_call.1} parent=1 // pred_region
      %s38 = ssub.s32 128, 128
      %39 = vsyncadd [#allocation6], %s38
      %s41 = sshll.u32 [#allocation7], 4
      %s42 = int_to_ptr.vmem [resolvable:$true] %s41
      %44 = dma.hbm_to_vmem [thread:$0]  %s2, 128, %s42, [#allocation6]
    $region13: #{tpu_custom_call.1} parent=1 // pred_fallthru
      _
    // Predicated region
    $region14: #{tpu_custom_call.1} parent=1 // pred_check
      _
    $region15: #{tpu_custom_call.1} parent=1 // pred_check_branch
      %46 = sbr.rel (0) target = $region17
    $region16: #{tpu_custom_call.1} parent=1 // pred_region
      %47 = dma.done [#allocation3], 640
    $region17: #{tpu_custom_call.1} parent=1 // pred_fallthru
      _
    // Predicated region
    $region18: #{tpu_custom_call.1} parent=1 // pred_check
      _
    $region19: #{tpu_custom_call.1} parent=1 // pred_check_branch
      %49 = sbr.rel (0) target = $region21
    $region20: #{tpu_custom_call.1} parent=1 // pred_region
      %50 = dma.done [#allocation6], 37888
    $region21: #{tpu_custom_call.1} parent=1 // pred_fallthru
      _
    // Predicated region
    $region22: #{tpu_custom_call.1} parent=1 // pred_check
      _
    $region23: #{tpu_custom_call.1} parent=1 // pred_check_branch
      %52 = sbr.rel (0) target = $region25
    $region24: #{tpu_custom_call.1} parent=1 // pred_region
      %53 = dma.done [#allocation6], 128
    $region25: #{tpu_custom_call.1} parent=1 // pred_fallthru
      _
    %v55 = vld [vmem:[#allocation2] sm:$0xff]
    %v56 = vld [vmem:[#allocation2 + $0x8] sm:$0xff]
    %v57 = vld [vmem:[#allocation2 + $0x10] sm:$0xf]
    %v58 = vld [vmem:[#allocation2 + $0x14] sm:$0xff]
    %v59 = vld [vmem:[#allocation2 + $0x1c] sm:$0xff]
    %v60 = vld [vmem:[#allocation2 + $0x24] sm:$0xf]
    %v61 = vld [vmem:[#allocation5] sm:$0xff]
    %v62 = vld [vmem:[#allocation5 + $0x8] sm:$0xff]
    %v63 = vld [vmem:[#allocation5 + $0x10] sm:$0xff]
    %v64 = vld [vmem:[#allocation5 + $0x18] sm:$0xff]
    %v65 = vld [vmem:[#allocation5 + $0x20] sm:$0xff]
    %v66 = vld [vmem:[#allocation5 + $0x28] sm:$0xff]
    %v67 = vld [vmem:[#allocation5 + $0x30] sm:$0xff]
    %v68 = vld [vmem:[#allocation5 + $0x38] sm:$0xff]
    %v69 = vld [vmem:[#allocation5 + $0x40] sm:$0xff]
    %v70 = vld [vmem:[#allocation5 + $0x48] sm:$0xff]
    %v71 = vld [vmem:[#allocation5 + $0x50] sm:$0xff]
    %v72 = vld [vmem:[#allocation5 + $0x58] sm:$0xff]
    %v73 = vld [vmem:[#allocation5 + $0x60] sm:$0xff]
    %v74 = vld [vmem:[#allocation5 + $0x68] sm:$0xff]
    %v75 = vld [vmem:[#allocation5 + $0x70] sm:$0xff]
    %v76 = vld [vmem:[#allocation5 + $0x78] sm:$0xff]
    %v77 = vld [vmem:[#allocation5 + $0x80] sm:$0xff]
    %v78 = vld [vmem:[#allocation5 + $0x88] sm:$0xff]
    %v79 = vld [vmem:[#allocation5 + $0x90] sm:$0xff]
    %v80 = vld [vmem:[#allocation5 + $0x98] sm:$0xff]
    %v81 = vld [vmem:[#allocation5 + $0xa0] sm:$0xff]
    %v82 = vld [vmem:[#allocation5 + $0xa8] sm:$0xff]
    %v83 = vld [vmem:[#allocation5 + $0xb0] sm:$0xff]
    %v84 = vld [vmem:[#allocation5 + $0xb8] sm:$0xff]
    %v85 = vld [vmem:[#allocation5 + $0xc0] sm:$0xff]
    %v86 = vld [vmem:[#allocation5 + $0xc8] sm:$0xff]
    %v87 = vld [vmem:[#allocation5 + $0xd0] sm:$0xff]
    %v88 = vld [vmem:[#allocation5 + $0xd8] sm:$0xff]
    %v89 = vld [vmem:[#allocation5 + $0xe0] sm:$0xff]
    %v90 = vld [vmem:[#allocation5 + $0xe8] sm:$0xff]
    %v91 = vld [vmem:[#allocation5 + $0xf0] sm:$0xff]
    %v92 = vld [vmem:[#allocation5 + $0xf8] sm:$0xff]
    %v93 = vld [vmem:[#allocation5 + $0x100] sm:$0xff]
    %v94 = vld [vmem:[#allocation5 + $0x108] sm:$0xff]
    %v95 = vld [vmem:[#allocation5 + $0x110] sm:$0xff]
    %v96 = vld [vmem:[#allocation5 + $0x118] sm:$0xff]
    %v97 = vld [vmem:[#allocation5 + $0x120] sm:$0xff]
    %v98 = vld [vmem:[#allocation5 + $0x128] sm:$0xff]
    %v99 = vld [vmem:[#allocation5 + $0x130] sm:$0xff]
    %v100 = vld [vmem:[#allocation5 + $0x138] sm:$0xff]
    %v101 = vld [vmem:[#allocation5 + $0x140] sm:$0xff]
    %v102 = vld [vmem:[#allocation5 + $0x148] sm:$0xff]
    %v103 = vld [vmem:[#allocation5 + $0x150] sm:$0xff]
    %v104 = vld [vmem:[#allocation5 + $0x158] sm:$0xff]
    %v105 = vld [vmem:[#allocation5 + $0x160] sm:$0xff]
    %v106 = vld [vmem:[#allocation5 + $0x168] sm:$0xff]
    %v107 = vld [vmem:[#allocation5 + $0x170] sm:$0xff]
    %v108 = vld [vmem:[#allocation5 + $0x178] sm:$0xff]
    %v109 = vld [vmem:[#allocation5 + $0x180] sm:$0xff]
    %v110 = vld [vmem:[#allocation5 + $0x188] sm:$0xff]
    %v111 = vld [vmem:[#allocation5 + $0x190] sm:$0xff]
    %v112 = vld [vmem:[#allocation5 + $0x198] sm:$0xff]
    %v113 = vld [vmem:[#allocation5 + $0x1a0] sm:$0xff]
    %v114 = vld [vmem:[#allocation5 + $0x1a8] sm:$0xff]
    %v115 = vld [vmem:[#allocation5 + $0x1b0] sm:$0xff]
    %v116 = vld [vmem:[#allocation5 + $0x1b8] sm:$0xff]
    %v117 = vld [vmem:[#allocation5 + $0x1c0] sm:$0xff]
    %v118 = vld [vmem:[#allocation5 + $0x1c8] sm:$0xff]
    %v119 = vld [vmem:[#allocation5 + $0x1d0] sm:$0xff]
    %v120 = vld [vmem:[#allocation5 + $0x1d8] sm:$0xff]
    %v121 = vld [vmem:[#allocation5 + $0x1e0] sm:$0xff]
    %v122 = vld [vmem:[#allocation5 + $0x1e8] sm:$0xff]
    %v123 = vld [vmem:[#allocation5 + $0x1f0] sm:$0xff]
    %v124 = vld [vmem:[#allocation5 + $0x1f8] sm:$0xff]
    %v125 = vld [vmem:[#allocation5 + $0x200] sm:$0xff]
    %v126 = vld [vmem:[#allocation5 + $0x208] sm:$0xff]
    %v127 = vld [vmem:[#allocation5 + $0x210] sm:$0xff]
    %v128 = vld [vmem:[#allocation5 + $0x218] sm:$0xff]
    %v129 = vld [vmem:[#allocation5 + $0x220] sm:$0xff]
    %v130 = vld [vmem:[#allocation5 + $0x228] sm:$0xff]
    %v131 = vld [vmem:[#allocation5 + $0x230] sm:$0xff]
    %v132 = vld [vmem:[#allocation5 + $0x238] sm:$0xff]
    %v133 = vld [vmem:[#allocation5 + $0x240] sm:$0xff]
    %v134 = vld [vmem:[#allocation5 + $0x248] sm:$0xff]
    %v135 = vld [vmem:[#allocation5 + $0x250] sm:$0xff]
    %v136 = vld [vmem:[#allocation5 + $0x258] sm:$0xff]
    %v137 = vld [vmem:[#allocation5 + $0x260] sm:$0xff]
    %v138 = vld [vmem:[#allocation5 + $0x268] sm:$0xff]
    %v139 = vld [vmem:[#allocation5 + $0x270] sm:$0xff]
    %v140 = vld [vmem:[#allocation5 + $0x278] sm:$0xff]
    %v141 = vld [vmem:[#allocation5 + $0x280] sm:$0xff]
    %v142 = vld [vmem:[#allocation5 + $0x288] sm:$0xff]
    %v143 = vld [vmem:[#allocation5 + $0x290] sm:$0xff]
    %v144 = vld [vmem:[#allocation5 + $0x298] sm:$0xff]
    %v145 = vld [vmem:[#allocation5 + $0x2a0] sm:$0xff]
    %v146 = vld [vmem:[#allocation5 + $0x2a8] sm:$0xff]
    %v147 = vld [vmem:[#allocation5 + $0x2b0] sm:$0xff]
    %v148 = vld [vmem:[#allocation5 + $0x2b8] sm:$0xff]
    %v149 = vld [vmem:[#allocation5 + $0x2c0] sm:$0xff]
    %v150 = vld [vmem:[#allocation5 + $0x2c8] sm:$0xff]
    %v151 = vld [vmem:[#allocation5 + $0x2d0] sm:$0xff]
    %v152 = vld [vmem:[#allocation5 + $0x2d8] sm:$0xff]
    %v153 = vld [vmem:[#allocation5 + $0x2e0] sm:$0xff]
    %v154 = vld [vmem:[#allocation5 + $0x2e8] sm:$0xff]
    %v155 = vld [vmem:[#allocation5 + $0x2f0] sm:$0xff]
    %v156 = vld [vmem:[#allocation5 + $0x2f8] sm:$0xff]
    %v157 = vld [vmem:[#allocation5 + $0x300] sm:$0xff]
    %v158 = vld [vmem:[#allocation5 + $0x308] sm:$0xff]
    %v159 = vld [vmem:[#allocation5 + $0x310] sm:$0xff]
    %v160 = vld [vmem:[#allocation5 + $0x318] sm:$0xff]
    %v161 = vld [vmem:[#allocation5 + $0x320] sm:$0xff]
    %v162 = vld [vmem:[#allocation5 + $0x328] sm:$0xff]
    %v163 = vld [vmem:[#allocation5 + $0x330] sm:$0xff]
    %v164 = vld [vmem:[#allocation5 + $0x338] sm:$0xff]
    %v165 = vld [vmem:[#allocation5 + $0x340] sm:$0xff]
    %v166 = vld [vmem:[#allocation5 + $0x348] sm:$0xff]
    %v167 = vld [vmem:[#allocation5 + $0x350] sm:$0xff]
    %v168 = vld [vmem:[#allocation5 + $0x358] sm:$0xff]
    %v169 = vld [vmem:[#allocation5 + $0x360] sm:$0xff]
    %v170 = vld [vmem:[#allocation5 + $0x368] sm:$0xff]
    %v171 = vld [vmem:[#allocation5 + $0x370] sm:$0xff]
    %v172 = vld [vmem:[#allocation5 + $0x378] sm:$0xff]
    %v173 = vld [vmem:[#allocation5 + $0x380] sm:$0xff]
    %v174 = vld [vmem:[#allocation5 + $0x388] sm:$0xff]
    %v175 = vld [vmem:[#allocation5 + $0x390] sm:$0xff]
    %v176 = vld [vmem:[#allocation5 + $0x398] sm:$0xff]
    %v177 = vld [vmem:[#allocation5 + $0x3a0] sm:$0xff]
    %v178 = vld [vmem:[#allocation5 + $0x3a8] sm:$0xff]
    %v179 = vld [vmem:[#allocation5 + $0x3b0] sm:$0xff]
    %v180 = vld [vmem:[#allocation5 + $0x3b8] sm:$0xff]
    %v181 = vld [vmem:[#allocation5 + $0x3c0] sm:$0xff]
    %v182 = vld [vmem:[#allocation5 + $0x3c8] sm:$0xff]
    %v183 = vld [vmem:[#allocation5 + $0x3d0] sm:$0xff]
    %v184 = vld [vmem:[#allocation5 + $0x3d8] sm:$0xff]
    %v185 = vld [vmem:[#allocation5 + $0x3e0] sm:$0xff]
    %v186 = vld [vmem:[#allocation5 + $0x3e8] sm:$0xff]
    %v187 = vld [vmem:[#allocation5 + $0x3f0] sm:$0xff]
    %v188 = vld [vmem:[#allocation5 + $0x3f8] sm:$0xff]
    %v189 = vld [vmem:[#allocation5 + $0x400] sm:$0xff]
    %v190 = vld [vmem:[#allocation5 + $0x408] sm:$0xff]
    %v191 = vld [vmem:[#allocation5 + $0x410] sm:$0xff]
    %v192 = vld [vmem:[#allocation5 + $0x418] sm:$0xff]
    %v193 = vld [vmem:[#allocation5 + $0x420] sm:$0xff]
    %v194 = vld [vmem:[#allocation5 + $0x428] sm:$0xff]
    %v195 = vld [vmem:[#allocation5 + $0x430] sm:$0xff]
    %v196 = vld [vmem:[#allocation5 + $0x438] sm:$0xff]
    %v197 = vld [vmem:[#allocation5 + $0x440] sm:$0xff]
    %v198 = vld [vmem:[#allocation5 + $0x448] sm:$0xff]
    %v199 = vld [vmem:[#allocation5 + $0x450] sm:$0xff]
    %v200 = vld [vmem:[#allocation5 + $0x458] sm:$0xff]
    %v201 = vld [vmem:[#allocation5 + $0x460] sm:$0xff]
    %v202 = vld [vmem:[#allocation5 + $0x468] sm:$0xff]
    %v203 = vld [vmem:[#allocation5 + $0x470] sm:$0xff]
    %v204 = vld [vmem:[#allocation5 + $0x478] sm:$0xff]
    %v205 = vld [vmem:[#allocation5 + $0x480] sm:$0xff]
    %v206 = vld [vmem:[#allocation5 + $0x488] sm:$0xff]
    %v207 = vld [vmem:[#allocation5 + $0x490] sm:$0xff]
    %v208 = vld [vmem:[#allocation5 + $0x498] sm:$0xff]
    %v209 = vld [vmem:[#allocation5 + $0x4a0] sm:$0xff]
    %v210 = vld [vmem:[#allocation5 + $0x4a8] sm:$0xff]
    %v211 = vld [vmem:[#allocation5 + $0x4b0] sm:$0xff]
    %v212 = vld [vmem:[#allocation5 + $0x4b8] sm:$0xff]
    %v213 = vld [vmem:[#allocation5 + $0x4c0] sm:$0xff]
    %v214 = vld [vmem:[#allocation5 + $0x4c8] sm:$0xff]
    %v215 = vld [vmem:[#allocation5 + $0x4d0] sm:$0xff]
    %v216 = vld [vmem:[#allocation5 + $0x4d8] sm:$0xff]
    %v217 = vld [vmem:[#allocation5 + $0x4e0] sm:$0xff]
    %v218 = vld [vmem:[#allocation5 + $0x4e8] sm:$0xff]
    %v219 = vld [vmem:[#allocation5 + $0x4f0] sm:$0xff]
    %v220 = vld [vmem:[#allocation5 + $0x4f8] sm:$0xff]
    %v221 = vld [vmem:[#allocation5 + $0x500] sm:$0xff]
    %v222 = vld [vmem:[#allocation5 + $0x508] sm:$0xff]
    %v223 = vld [vmem:[#allocation5 + $0x510] sm:$0xff]
    %v224 = vld [vmem:[#allocation5 + $0x518] sm:$0xff]
    %v225 = vld [vmem:[#allocation5 + $0x520] sm:$0xff]
    %v226 = vld [vmem:[#allocation5 + $0x528] sm:$0xff]
    %v227 = vld [vmem:[#allocation5 + $0x530] sm:$0xff]
    %v228 = vld [vmem:[#allocation5 + $0x538] sm:$0xff]
    %v229 = vld [vmem:[#allocation5 + $0x540] sm:$0xff]
    %v230 = vld [vmem:[#allocation5 + $0x548] sm:$0xff]
    %v231 = vld [vmem:[#allocation5 + $0x550] sm:$0xff]
    %v232 = vld [vmem:[#allocation5 + $0x558] sm:$0xff]
    %v233 = vld [vmem:[#allocation5 + $0x560] sm:$0xff]
    %v234 = vld [vmem:[#allocation5 + $0x568] sm:$0xff]
    %v235 = vld [vmem:[#allocation5 + $0x570] sm:$0xff]
    %v236 = vld [vmem:[#allocation5 + $0x578] sm:$0xff]
    %v237 = vld [vmem:[#allocation5 + $0x580] sm:$0xff]
    %v238 = vld [vmem:[#allocation5 + $0x588] sm:$0xff]
    %v239 = vld [vmem:[#allocation5 + $0x590] sm:$0xff]
    %v240 = vld [vmem:[#allocation5 + $0x598] sm:$0xff]
    %v241 = vld [vmem:[#allocation5 + $0x5a0] sm:$0xff]
    %v242 = vld [vmem:[#allocation5 + $0x5a8] sm:$0xff]
    %v243 = vld [vmem:[#allocation5 + $0x5b0] sm:$0xff]
    %v244 = vld [vmem:[#allocation5 + $0x5b8] sm:$0xff]
    %v245 = vld [vmem:[#allocation5 + $0x5c0] sm:$0xff]
    %v246 = vld [vmem:[#allocation5 + $0x5c8] sm:$0xff]
    %v247 = vld [vmem:[#allocation5 + $0x5d0] sm:$0xff]
    %v248 = vld [vmem:[#allocation5 + $0x5d8] sm:$0xff]
    %v249 = vld [vmem:[#allocation5 + $0x5e0] sm:$0xff]
    %v250 = vld [vmem:[#allocation5 + $0x5e8] sm:$0xff]
    %v251 = vld [vmem:[#allocation5 + $0x5f0] sm:$0xff]
    %v252 = vld [vmem:[#allocation5 + $0x5f8] sm:$0xff]
    %v253 = vld [vmem:[#allocation5 + $0x600] sm:$0xff]
    %v254 = vld [vmem:[#allocation5 + $0x608] sm:$0xff]
    %v255 = vld [vmem:[#allocation5 + $0x610] sm:$0xff]
    %v256 = vld [vmem:[#allocation5 + $0x618] sm:$0xff]
    %v257 = vld [vmem:[#allocation5 + $0x620] sm:$0xff]
    %v258 = vld [vmem:[#allocation5 + $0x628] sm:$0xff]
    %v259 = vld [vmem:[#allocation5 + $0x630] sm:$0xff]
    %v260 = vld [vmem:[#allocation5 + $0x638] sm:$0xff]
    %v261 = vld [vmem:[#allocation5 + $0x640] sm:$0xff]
    %v262 = vld [vmem:[#allocation5 + $0x648] sm:$0xff]
    %v263 = vld [vmem:[#allocation5 + $0x650] sm:$0xff]
    %v264 = vld [vmem:[#allocation5 + $0x658] sm:$0xff]
    %v265 = vld [vmem:[#allocation5 + $0x660] sm:$0xff]
    %v266 = vld [vmem:[#allocation5 + $0x668] sm:$0xff]
    %v267 = vld [vmem:[#allocation5 + $0x670] sm:$0xff]
    %v268 = vld [vmem:[#allocation5 + $0x678] sm:$0xff]
    %v269 = vld [vmem:[#allocation5 + $0x680] sm:$0xff]
    %v270 = vld [vmem:[#allocation5 + $0x688] sm:$0xff]
    %v271 = vld [vmem:[#allocation5 + $0x690] sm:$0xff]
    %v272 = vld [vmem:[#allocation5 + $0x698] sm:$0xff]
    %v273 = vld [vmem:[#allocation5 + $0x6a0] sm:$0xff]
    %v274 = vld [vmem:[#allocation5 + $0x6a8] sm:$0xff]
    %v275 = vld [vmem:[#allocation5 + $0x6b0] sm:$0xff]
    %v276 = vld [vmem:[#allocation5 + $0x6b8] sm:$0xff]
    %v277 = vld [vmem:[#allocation5 + $0x6c0] sm:$0xff]
    %v278 = vld [vmem:[#allocation5 + $0x6c8] sm:$0xff]
    %v279 = vld [vmem:[#allocation5 + $0x6d0] sm:$0xff]
    %v280 = vld [vmem:[#allocation5 + $0x6d8] sm:$0xff]
    %v281 = vld [vmem:[#allocation5 + $0x6e0] sm:$0xff]
    %v282 = vld [vmem:[#allocation5 + $0x6e8] sm:$0xff]
    %v283 = vld [vmem:[#allocation5 + $0x6f0] sm:$0xff]
    %v284 = vld [vmem:[#allocation5 + $0x6f8] sm:$0xff]
    %v285 = vld [vmem:[#allocation5 + $0x700] sm:$0xff]
    %v286 = vld [vmem:[#allocation5 + $0x708] sm:$0xff]
    %v287 = vld [vmem:[#allocation5 + $0x710] sm:$0xff]
    %v288 = vld [vmem:[#allocation5 + $0x718] sm:$0xff]
    %v289 = vld [vmem:[#allocation5 + $0x720] sm:$0xff]
    %v290 = vld [vmem:[#allocation5 + $0x728] sm:$0xff]
    %v291 = vld [vmem:[#allocation5 + $0x730] sm:$0xff]
    %v292 = vld [vmem:[#allocation5 + $0x738] sm:$0xff]
    %v293 = vld [vmem:[#allocation5 + $0x740] sm:$0xff]
    %v294 = vld [vmem:[#allocation5 + $0x748] sm:$0xff]
    %v295 = vld [vmem:[#allocation5 + $0x750] sm:$0xff]
    %v296 = vld [vmem:[#allocation5 + $0x758] sm:$0xff]
    %v297 = vld [vmem:[#allocation5 + $0x760] sm:$0xff]
    %v298 = vld [vmem:[#allocation5 + $0x768] sm:$0xff]
    %v299 = vld [vmem:[#allocation5 + $0x770] sm:$0xff]
    %v300 = vld [vmem:[#allocation5 + $0x778] sm:$0xff]
    %v301 = vld [vmem:[#allocation5 + $0x780] sm:$0xff]
    %v302 = vld [vmem:[#allocation5 + $0x788] sm:$0xff]
    %v303 = vld [vmem:[#allocation5 + $0x790] sm:$0xff]
    %v304 = vld [vmem:[#allocation5 + $0x798] sm:$0xff]
    %v305 = vld [vmem:[#allocation5 + $0x7a0] sm:$0xff]
    %v306 = vld [vmem:[#allocation5 + $0x7a8] sm:$0xff]
    %v307 = vld [vmem:[#allocation5 + $0x7b0] sm:$0xff]
    %v308 = vld [vmem:[#allocation5 + $0x7b8] sm:$0xff]
    %v309 = vld [vmem:[#allocation5 + $0x7c0] sm:$0xff]
    %v310 = vld [vmem:[#allocation5 + $0x7c8] sm:$0xff]
    %v311 = vld [vmem:[#allocation5 + $0x7d0] sm:$0xff]
    %v312 = vld [vmem:[#allocation5 + $0x7d8] sm:$0xff]
    %v313 = vld [vmem:[#allocation5 + $0x7e0] sm:$0xff]
    %v314 = vld [vmem:[#allocation5 + $0x7e8] sm:$0xff]
    %v315 = vld [vmem:[#allocation5 + $0x7f0] sm:$0xff]
    %v316 = vld [vmem:[#allocation5 + $0x7f8] sm:$0xff]
    %v317 = vld [vmem:[#allocation5 + $0x800] sm:$0xff]
    %v318 = vld [vmem:[#allocation5 + $0x808] sm:$0xff]
    %v319 = vld [vmem:[#allocation5 + $0x810] sm:$0xff]
    %v320 = vld [vmem:[#allocation5 + $0x818] sm:$0xff]
    %v321 = vld [vmem:[#allocation5 + $0x820] sm:$0xff]
    %v322 = vld [vmem:[#allocation5 + $0x828] sm:$0xff]
    %v323 = vld [vmem:[#allocation5 + $0x830] sm:$0xff]
    %v324 = vld [vmem:[#allocation5 + $0x838] sm:$0xff]
    %v325 = vld [vmem:[#allocation5 + $0x840] sm:$0xff]
    %v326 = vld [vmem:[#allocation5 + $0x848] sm:$0xff]
    %v327 = vld [vmem:[#allocation5 + $0x850] sm:$0xff]
    %v328 = vld [vmem:[#allocation5 + $0x858] sm:$0xff]
    %v329 = vld [vmem:[#allocation5 + $0x860] sm:$0xff]
    %v330 = vld [vmem:[#allocation5 + $0x868] sm:$0xff]
    %v331 = vld [vmem:[#allocation5 + $0x870] sm:$0xff]
    %v332 = vld [vmem:[#allocation5 + $0x878] sm:$0xff]
    %v333 = vld [vmem:[#allocation5 + $0x880] sm:$0xff]
    %v334 = vld [vmem:[#allocation5 + $0x888] sm:$0xff]
    %v335 = vld [vmem:[#allocation5 + $0x890] sm:$0xff]
    %v336 = vld [vmem:[#allocation5 + $0x898] sm:$0xff]
    %v337 = vld [vmem:[#allocation5 + $0x8a0] sm:$0xff]
    %v338 = vld [vmem:[#allocation5 + $0x8a8] sm:$0xff]
    %v339 = vld [vmem:[#allocation5 + $0x8b0] sm:$0xff]
    %v340 = vld [vmem:[#allocation5 + $0x8b8] sm:$0xff]
    %v341 = vld [vmem:[#allocation5 + $0x8c0] sm:$0xff]
    %v342 = vld [vmem:[#allocation5 + $0x8c8] sm:$0xff]
    %v343 = vld [vmem:[#allocation5 + $0x8d0] sm:$0xff]
    %v344 = vld [vmem:[#allocation5 + $0x8d8] sm:$0xff]
    %v345 = vld [vmem:[#allocation5 + $0x8e0] sm:$0xff]
    %v346 = vld [vmem:[#allocation5 + $0x8e8] sm:$0xff]
    %v347 = vld [vmem:[#allocation5 + $0x8f0] sm:$0xff]
    %v348 = vld [vmem:[#allocation5 + $0x8f8] sm:$0xff]
    %v349 = vld [vmem:[#allocation5 + $0x900] sm:$0xff]
    %v350 = vld [vmem:[#allocation5 + $0x908] sm:$0xff]
    %v351 = vld [vmem:[#allocation5 + $0x910] sm:$0xff]
    %v352 = vld [vmem:[#allocation5 + $0x918] sm:$0xff]
    %v353 = vld [vmem:[#allocation5 + $0x920] sm:$0x33]
    %v354 = vld [vmem:[#allocation5 + $0x928] sm:$0x33]
    %v355 = vld [vmem:[#allocation5 + $0x930] sm:$0x33]
    %v356 = vld [vmem:[#allocation5 + $0x938] sm:$0x33]
    %v357 = vld [vmem:[#allocation7] sm:$0xff]
    %v359 = vlaneseq
    %v360 = vshrl.u32 %v359, 7
    %v361 = vsub.s32 0, %v360
    %v362 = vrot.slane %v357, %v361
    %v363 = vlaneseq
    %v364 = vshrl.u32 %v363, 7
    %v365 = vsub.s32 1, %v364
    %v366 = vrot.slane %v357, %v365
    %v367 = vlaneseq
    %v368 = vshrl.u32 %v367, 7
    %v369 = vsub.s32 2, %v368
    %v370 = vrot.slane %v357, %v369
    %v371 = vlaneseq
    %v372 = vshrl.u32 %v371, 7
    %v373 = vsub.s32 3, %v372
    %v374 = vrot.slane %v357, %v373
    %v375 = vlaneseq
    %v376 = vshrl.u32 %v375, 7
    %v377 = vsub.s32 4, %v376
    %v378 = vrot.slane %v357, %v377
    %v379 = vlaneseq
    %v380 = vshrl.u32 %v379, 7
    %v381 = vsub.s32 5, %v380
    %v382 = vrot.slane %v357, %v381
    %v383 = vlaneseq
    %v384 = vshrl.u32 %v383, 7
    %v385 = vsub.s32 6, %v384
    %v386 = vrot.slane %v357, %v385
    %v387 = vlaneseq
    %v388 = vshrl.u32 %v387, 7
    %v389 = vsub.s32 7, %v388
    %v390 = vrot.slane %v357, %v389
    %v405 = vunpack.c.l.b16 %v55
    %v406 = vunpack.c.h.b16 %v55
    %v407 = vunpack.c.l.b16 %v56
    %v408 = vunpack.c.h.b16 %v56
    %v409 = vunpack.c.l.b16 %v57
    %v410 = vunpack.c.l.b16 %v58
    %v411 = vunpack.c.h.b16 %v58
    %v412 = vunpack.c.l.b16 %v59
    %v413 = vunpack.c.h.b16 %v59
    %v414 = vunpack.c.l.b16 %v60
    %v415 = vpack.c.b16 %v410, %v405
    %v416 = vpack.c.b16 %v411, %v406
    %v417 = vpack.c.b16 %v412, %v407
    %v418 = vpack.c.b16 %v413, %v408
    %v419 = vpack.c.b16 %v414, %v409
    %v720 = vunpack.c.l.b16 %v61
    %v721 = vunpack.c.h.b16 %v61
    %v722 = vunpack.c.l.b16 %v62
    %v723 = vunpack.c.h.b16 %v62
    %v724 = vunpack.c.l.b16 %v63
    %v725 = vunpack.c.h.b16 %v63
    %v726 = vunpack.c.l.b16 %v64
    %v727 = vunpack.c.h.b16 %v64
    %v728 = vunpack.c.l.b16 %v65
    %v729 = vunpack.c.h.b16 %v65
    %v730 = vunpack.c.l.b16 %v66
    %v731 = vunpack.c.h.b16 %v66
    %v732 = vunpack.c.l.b16 %v67
    %v733 = vunpack.c.h.b16 %v67
    %v734 = vunpack.c.l.b16 %v68
    %v735 = vunpack.c.h.b16 %v68
    %v736 = vunpack.c.l.b16 %v69
    %v737 = vunpack.c.h.b16 %v69
    %v738 = vunpack.c.l.b16 %v70
    %v739 = vunpack.c.h.b16 %v70
    %v740 = vunpack.c.l.b16 %v71
    %v741 = vunpack.c.h.b16 %v71
    %v742 = vunpack.c.l.b16 %v72
    %v743 = vunpack.c.h.b16 %v72
    %v744 = vunpack.c.l.b16 %v73
    %v745 = vunpack.c.h.b16 %v73
    %v746 = vunpack.c.l.b16 %v74
    %v747 = vunpack.c.h.b16 %v74
    %v748 = vunpack.c.l.b16 %v75
    %v749 = vunpack.c.h.b16 %v75
    %v750 = vunpack.c.l.b16 %v76
    %v751 = vunpack.c.h.b16 %v76
    %v752 = vunpack.c.l.b16 %v77
    %v753 = vunpack.c.h.b16 %v77
    %v754 = vunpack.c.l.b16 %v78
    %v755 = vunpack.c.h.b16 %v78
    %v756 = vunpack.c.l.b16 %v79
    %v757 = vunpack.c.h.b16 %v79
    %v758 = vunpack.c.l.b16 %v80
    %v759 = vunpack.c.h.b16 %v80
    %v760 = vunpack.c.l.b16 %v81
    %v761 = vunpack.c.h.b16 %v81
    %v762 = vunpack.c.l.b16 %v82
    %v763 = vunpack.c.h.b16 %v82
    %v764 = vunpack.c.l.b16 %v83
    %v765 = vunpack.c.h.b16 %v83
    %v766 = vunpack.c.l.b16 %v84
    %v767 = vunpack.c.h.b16 %v84
    %v768 = vunpack.c.l.b16 %v85
    %v769 = vunpack.c.h.b16 %v85
    %v770 = vunpack.c.l.b16 %v86
    %v771 = vunpack.c.h.b16 %v86
    %v772 = vunpack.c.l.b16 %v87
    %v773 = vunpack.c.h.b16 %v87
    %v774 = vunpack.c.l.b16 %v88
    %v775 = vunpack.c.h.b16 %v88
    %v776 = vunpack.c.l.b16 %v89
    %v777 = vunpack.c.h.b16 %v89
    %v778 = vunpack.c.l.b16 %v90
    %v779 = vunpack.c.h.b16 %v90
    %v780 = vunpack.c.l.b16 %v91
    %v781 = vunpack.c.h.b16 %v91
    %v782 = vunpack.c.l.b16 %v92
    %v783 = vunpack.c.h.b16 %v92
    %v784 = vunpack.c.l.b16 %v93
    %v785 = vunpack.c.h.b16 %v93
    %v786 = vunpack.c.l.b16 %v94
    %v787 = vunpack.c.h.b16 %v94
    %v788 = vunpack.c.l.b16 %v95
    %v789 = vunpack.c.h.b16 %v95
    %v790 = vunpack.c.l.b16 %v96
    %v791 = vunpack.c.h.b16 %v96
    %v792 = vunpack.c.l.b16 %v97
    %v793 = vunpack.c.h.b16 %v97
    %v794 = vunpack.c.l.b16 %v98
    %v795 = vunpack.c.h.b16 %v98
    %v796 = vunpack.c.l.b16 %v99
    %v797 = vunpack.c.h.b16 %v99
    %v798 = vunpack.c.l.b16 %v100
    %v799 = vunpack.c.h.b16 %v100
    %v800 = vunpack.c.l.b16 %v101
    %v801 = vunpack.c.h.b16 %v101
    %v802 = vunpack.c.l.b16 %v102
    %v803 = vunpack.c.h.b16 %v102
    %v804 = vunpack.c.l.b16 %v103
    %v805 = vunpack.c.h.b16 %v103
    %v806 = vunpack.c.l.b16 %v104
    %v807 = vunpack.c.h.b16 %v104
    %v808 = vunpack.c.l.b16 %v105
    %v809 = vunpack.c.h.b16 %v105
    %v810 = vunpack.c.l.b16 %v106
    %v811 = vunpack.c.h.b16 %v106
    %v812 = vunpack.c.l.b16 %v107
    %v813 = vunpack.c.h.b16 %v107
    %v814 = vunpack.c.l.b16 %v108
    %v815 = vunpack.c.h.b16 %v108
    %v816 = vunpack.c.l.b16 %v109
    %v817 = vunpack.c.h.b16 %v109
    %v818 = vunpack.c.l.b16 %v110
    %v819 = vunpack.c.h.b16 %v110
    %v820 = vunpack.c.l.b16 %v111
    %v821 = vunpack.c.h.b16 %v111
    %v822 = vunpack.c.l.b16 %v112
    %v823 = vunpack.c.h.b16 %v112
    %v824 = vunpack.c.l.b16 %v113
    %v825 = vunpack.c.h.b16 %v113
    %v826 = vunpack.c.l.b16 %v114
    %v827 = vunpack.c.h.b16 %v114
    %v828 = vunpack.c.l.b16 %v115
    %v829 = vunpack.c.h.b16 %v115
    %v830 = vunpack.c.l.b16 %v116
    %v831 = vunpack.c.h.b16 %v116
    %v832 = vunpack.c.l.b16 %v117
    %v833 = vunpack.c.h.b16 %v117
    %v834 = vunpack.c.l.b16 %v118
    %v835 = vunpack.c.h.b16 %v118
    %v836 = vunpack.c.l.b16 %v119
    %v837 = vunpack.c.h.b16 %v119
    %v838 = vunpack.c.l.b16 %v120
    %v839 = vunpack.c.h.b16 %v120
    %v840 = vunpack.c.l.b16 %v121
    %v841 = vunpack.c.h.b16 %v121
    %v842 = vunpack.c.l.b16 %v122
    %v843 = vunpack.c.h.b16 %v122
    %v844 = vunpack.c.l.b16 %v123
    %v845 = vunpack.c.h.b16 %v123
    %v846 = vunpack.c.l.b16 %v124
    %v847 = vunpack.c.h.b16 %v124
    %v848 = vunpack.c.l.b16 %v125
    %v849 = vunpack.c.h.b16 %v125
    %v850 = vunpack.c.l.b16 %v126
    %v851 = vunpack.c.h.b16 %v126
    %v852 = vunpack.c.l.b16 %v127
    %v853 = vunpack.c.h.b16 %v127
    %v854 = vunpack.c.l.b16 %v128
    %v855 = vunpack.c.h.b16 %v128
    %v856 = vunpack.c.l.b16 %v129
    %v857 = vunpack.c.h.b16 %v129
    %v858 = vunpack.c.l.b16 %v130
    %v859 = vunpack.c.h.b16 %v130
    %v860 = vunpack.c.l.b16 %v131
    %v861 = vunpack.c.h.b16 %v131
    %v862 = vunpack.c.l.b16 %v132
    %v863 = vunpack.c.h.b16 %v132
    %v864 = vunpack.c.l.b16 %v133
    %v865 = vunpack.c.h.b16 %v133
    %v866 = vunpack.c.l.b16 %v134
    %v867 = vunpack.c.h.b16 %v134
    %v868 = vunpack.c.l.b16 %v135
    %v869 = vunpack.c.h.b16 %v135
    %v870 = vunpack.c.l.b16 %v136
    %v871 = vunpack.c.h.b16 %v136
    %v872 = vunpack.c.l.b16 %v137
    %v873 = vunpack.c.h.b16 %v137
    %v874 = vunpack.c.l.b16 %v138
    %v875 = vunpack.c.h.b16 %v138
    %v876 = vunpack.c.l.b16 %v139
    %v877 = vunpack.c.h.b16 %v139
    %v878 = vunpack.c.l.b16 %v140
    %v879 = vunpack.c.h.b16 %v140
    %v880 = vunpack.c.l.b16 %v141
    %v881 = vunpack.c.h.b16 %v141
    %v882 = vunpack.c.l.b16 %v142
    %v883 = vunpack.c.h.b16 %v142
    %v884 = vunpack.c.l.b16 %v143
    %v885 = vunpack.c.h.b16 %v143
    %v886 = vunpack.c.l.b16 %v144
    %v887 = vunpack.c.h.b16 %v144
    %v888 = vunpack.c.l.b16 %v145
    %v889 = vunpack.c.h.b16 %v145
    %v890 = vunpack.c.l.b16 %v146
    %v891 = vunpack.c.h.b16 %v146
    %v892 = vunpack.c.l.b16 %v147
    %v893 = vunpack.c.h.b16 %v147
    %v894 = vunpack.c.l.b16 %v148
    %v895 = vunpack.c.h.b16 %v148
    %v896 = vunpack.c.l.b16 %v149
    %v897 = vunpack.c.h.b16 %v149
    %v898 = vunpack.c.l.b16 %v150
    %v899 = vunpack.c.h.b16 %v150
    %v900 = vunpack.c.l.b16 %v151
    %v901 = vunpack.c.h.b16 %v151
    %v902 = vunpack.c.l.b16 %v152
    %v903 = vunpack.c.h.b16 %v152
    %v904 = vunpack.c.l.b16 %v153
    %v905 = vunpack.c.h.b16 %v153
    %v906 = vunpack.c.l.b16 %v154
    %v907 = vunpack.c.h.b16 %v154
    %v908 = vunpack.c.l.b16 %v155
    %v909 = vunpack.c.h.b16 %v155
    %v910 = vunpack.c.l.b16 %v156
    %v911 = vunpack.c.h.b16 %v156
    %v912 = vunpack.c.l.b16 %v157
    %v913 = vunpack.c.h.b16 %v157
    %v914 = vunpack.c.l.b16 %v158
    %v915 = vunpack.c.h.b16 %v158
    %v916 = vunpack.c.l.b16 %v159
    %v917 = vunpack.c.h.b16 %v159
    %v918 = vunpack.c.l.b16 %v160
    %v919 = vunpack.c.h.b16 %v160
    %v920 = vunpack.c.l.b16 %v161
    %v921 = vunpack.c.h.b16 %v161
    %v922 = vunpack.c.l.b16 %v162
    %v923 = vunpack.c.h.b16 %v162
    %v924 = vunpack.c.l.b16 %v163
    %v925 = vunpack.c.h.b16 %v163
    %v926 = vunpack.c.l.b16 %v164
    %v927 = vunpack.c.h.b16 %v164
    %v928 = vunpack.c.l.b16 %v165
    %v929 = vunpack.c.h.b16 %v165
    %v930 = vunpack.c.l.b16 %v166
    %v931 = vunpack.c.h.b16 %v166
    %v932 = vunpack.c.l.b16 %v167
    %v933 = vunpack.c.h.b16 %v167
    %v934 = vunpack.c.l.b16 %v168
    %v935 = vunpack.c.h.b16 %v168
    %v936 = vunpack.c.l.b16 %v169
    %v937 = vunpack.c.h.b16 %v169
    %v938 = vunpack.c.l.b16 %v170
    %v939 = vunpack.c.h.b16 %v170
    %v940 = vunpack.c.l.b16 %v171
    %v941 = vunpack.c.h.b16 %v171
    %v942 = vunpack.c.l.b16 %v172
    %v943 = vunpack.c.h.b16 %v172
    %v944 = vunpack.c.l.b16 %v173
    %v945 = vunpack.c.h.b16 %v173
    %v946 = vunpack.c.l.b16 %v174
    %v947 = vunpack.c.h.b16 %v174
    %v948 = vunpack.c.l.b16 %v175
    %v949 = vunpack.c.h.b16 %v175
    %v950 = vunpack.c.l.b16 %v176
    %v951 = vunpack.c.h.b16 %v176
    %v952 = vunpack.c.l.b16 %v177
    %v953 = vunpack.c.h.b16 %v177
    %v954 = vunpack.c.l.b16 %v178
    %v955 = vunpack.c.h.b16 %v178
    %v956 = vunpack.c.l.b16 %v179
    %v957 = vunpack.c.h.b16 %v179
    %v958 = vunpack.c.l.b16 %v180
    %v959 = vunpack.c.h.b16 %v180
    %v960 = vunpack.c.l.b16 %v181
    %v961 = vunpack.c.h.b16 %v181
    %v962 = vunpack.c.l.b16 %v182
    %v963 = vunpack.c.h.b16 %v182
    %v964 = vunpack.c.l.b16 %v183
    %v965 = vunpack.c.h.b16 %v183
    %v966 = vunpack.c.l.b16 %v184
    %v967 = vunpack.c.h.b16 %v184
    %v968 = vunpack.c.l.b16 %v185
    %v969 = vunpack.c.h.b16 %v185
    %v970 = vunpack.c.l.b16 %v186
    %v971 = vunpack.c.h.b16 %v186
    %v972 = vunpack.c.l.b16 %v187
    %v973 = vunpack.c.h.b16 %v187
    %v974 = vunpack.c.l.b16 %v188
    %v975 = vunpack.c.h.b16 %v188
    %v976 = vunpack.c.l.b16 %v189
    %v977 = vunpack.c.h.b16 %v189
    %v978 = vunpack.c.l.b16 %v190
    %v979 = vunpack.c.h.b16 %v190
    %v980 = vunpack.c.l.b16 %v191
    %v981 = vunpack.c.h.b16 %v191
    %v982 = vunpack.c.l.b16 %v192
    %v983 = vunpack.c.h.b16 %v192
    %v984 = vunpack.c.l.b16 %v193
    %v985 = vunpack.c.h.b16 %v193
    %v986 = vunpack.c.l.b16 %v194
    %v987 = vunpack.c.h.b16 %v194
    %v988 = vunpack.c.l.b16 %v195
    %v989 = vunpack.c.h.b16 %v195
    %v990 = vunpack.c.l.b16 %v196
    %v991 = vunpack.c.h.b16 %v196
    %v992 = vunpack.c.l.b16 %v197
    %v993 = vunpack.c.h.b16 %v197
    %v994 = vunpack.c.l.b16 %v198
    %v995 = vunpack.c.h.b16 %v198
    %v996 = vunpack.c.l.b16 %v199
    %v997 = vunpack.c.h.b16 %v199
    %v998 = vunpack.c.l.b16 %v200
    %v999 = vunpack.c.h.b16 %v200
    %v1000 = vunpack.c.l.b16 %v201
    %v1001 = vunpack.c.h.b16 %v201
    %v1002 = vunpack.c.l.b16 %v202
    %v1003 = vunpack.c.h.b16 %v202
    %v1004 = vunpack.c.l.b16 %v203
    %v1005 = vunpack.c.h.b16 %v203
    %v1006 = vunpack.c.l.b16 %v204
    %v1007 = vunpack.c.h.b16 %v204
    %v1008 = vunpack.c.l.b16 %v205
    %v1009 = vunpack.c.h.b16 %v205
    %v1010 = vunpack.c.l.b16 %v206
    %v1011 = vunpack.c.h.b16 %v206
    %v1012 = vunpack.c.l.b16 %v207
    %v1013 = vunpack.c.h.b16 %v207
    %v1014 = vunpack.c.l.b16 %v208
    %v1015 = vunpack.c.h.b16 %v208
    %v1016 = vunpack.c.l.b16 %v209
    %v1017 = vunpack.c.h.b16 %v209
    %v1018 = vunpack.c.l.b16 %v210
    %v1019 = vunpack.c.h.b16 %v210
    %v1020 = vunpack.c.l.b16 %v211
    %v1021 = vunpack.c.h.b16 %v211
    %v1022 = vunpack.c.l.b16 %v212
    %v1023 = vunpack.c.h.b16 %v212
    %v1024 = vunpack.c.l.b16 %v213
    %v1025 = vunpack.c.h.b16 %v213
    %v1026 = vunpack.c.l.b16 %v214
    %v1027 = vunpack.c.h.b16 %v214
    %v1028 = vunpack.c.l.b16 %v215
    %v1029 = vunpack.c.h.b16 %v215
    %v1030 = vunpack.c.l.b16 %v216
    %v1031 = vunpack.c.h.b16 %v216
    %v1032 = vunpack.c.l.b16 %v217
    %v1033 = vunpack.c.h.b16 %v217
    %v1034 = vunpack.c.l.b16 %v218
    %v1035 = vunpack.c.h.b16 %v218
    %v1036 = vunpack.c.l.b16 %v219
    %v1037 = vunpack.c.h.b16 %v219
    %v1038 = vunpack.c.l.b16 %v220
    %v1039 = vunpack.c.h.b16 %v220
    %v1040 = vunpack.c.l.b16 %v221
    %v1041 = vunpack.c.h.b16 %v221
    %v1042 = vunpack.c.l.b16 %v222
    %v1043 = vunpack.c.h.b16 %v222
    %v1044 = vunpack.c.l.b16 %v223
    %v1045 = vunpack.c.h.b16 %v223
    %v1046 = vunpack.c.l.b16 %v224
    %v1047 = vunpack.c.h.b16 %v224
    %v1048 = vunpack.c.l.b16 %v225
    %v1049 = vunpack.c.h.b16 %v225
    %v1050 = vunpack.c.l.b16 %v226
    %v1051 = vunpack.c.h.b16 %v226
    %v1052 = vunpack.c.l.b16 %v227
    %v1053 = vunpack.c.h.b16 %v227
    %v1054 = vunpack.c.l.b16 %v228
    %v1055 = vunpack.c.h.b16 %v228
    %v1056 = vunpack.c.l.b16 %v229
    %v1057 = vunpack.c.h.b16 %v229
    %v1058 = vunpack.c.l.b16 %v230
    %v1059 = vunpack.c.h.b16 %v230
    %v1060 = vunpack.c.l.b16 %v231
    %v1061 = vunpack.c.h.b16 %v231
    %v1062 = vunpack.c.l.b16 %v232
    %v1063 = vunpack.c.h.b16 %v232
    %v1064 = vunpack.c.l.b16 %v233
    %v1065 = vunpack.c.h.b16 %v233
    %v1066 = vunpack.c.l.b16 %v234
    %v1067 = vunpack.c.h.b16 %v234
    %v1068 = vunpack.c.l.b16 %v235
    %v1069 = vunpack.c.h.b16 %v235
    %v1070 = vunpack.c.l.b16 %v236
    %v1071 = vunpack.c.h.b16 %v236
    %v1072 = vunpack.c.l.b16 %v237
    %v1073 = vunpack.c.h.b16 %v237
    %v1074 = vunpack.c.l.b16 %v238
    %v1075 = vunpack.c.h.b16 %v238
    %v1076 = vunpack.c.l.b16 %v239
    %v1077 = vunpack.c.h.b16 %v239
    %v1078 = vunpack.c.l.b16 %v240
    %v1079 = vunpack.c.h.b16 %v240
    %v1080 = vunpack.c.l.b16 %v241
    %v1081 = vunpack.c.h.b16 %v241
    %v1082 = vunpack.c.l.b16 %v242
    %v1083 = vunpack.c.h.b16 %v242
    %v1084 = vunpack.c.l.b16 %v243
    %v1085 = vunpack.c.h.b16 %v243
    %v1086 = vunpack.c.l.b16 %v244
    %v1087 = vunpack.c.h.b16 %v244
    %v1088 = vunpack.c.l.b16 %v245
    %v1089 = vunpack.c.h.b16 %v245
    %v1090 = vunpack.c.l.b16 %v246
    %v1091 = vunpack.c.h.b16 %v246
    %v1092 = vunpack.c.l.b16 %v247
    %v1093 = vunpack.c.h.b16 %v247
    %v1094 = vunpack.c.l.b16 %v248
    %v1095 = vunpack.c.h.b16 %v248
    %v1096 = vunpack.c.l.b16 %v249
    %v1097 = vunpack.c.h.b16 %v249
    %v1098 = vunpack.c.l.b16 %v250
    %v1099 = vunpack.c.h.b16 %v250
    %v1100 = vunpack.c.l.b16 %v251
    %v1101 = vunpack.c.h.b16 %v251
    %v1102 = vunpack.c.l.b16 %v252
    %v1103 = vunpack.c.h.b16 %v252
    %v1104 = vunpack.c.l.b16 %v253
    %v1105 = vunpack.c.h.b16 %v253
    %v1106 = vunpack.c.l.b16 %v254
    %v1107 = vunpack.c.h.b16 %v254
    %v1108 = vunpack.c.l.b16 %v255
    %v1109 = vunpack.c.h.b16 %v255
    %v1110 = vunpack.c.l.b16 %v256
    %v1111 = vunpack.c.h.b16 %v256
    %v1112 = vunpack.c.l.b16 %v257
    %v1113 = vunpack.c.h.b16 %v257
    %v1114 = vunpack.c.l.b16 %v258
    %v1115 = vunpack.c.h.b16 %v258
    %v1116 = vunpack.c.l.b16 %v259
    %v1117 = vunpack.c.h.b16 %v259
    %v1118 = vunpack.c.l.b16 %v260
    %v1119 = vunpack.c.h.b16 %v260
    %v1120 = vunpack.c.l.b16 %v261
    %v1121 = vunpack.c.h.b16 %v261
    %v1122 = vunpack.c.l.b16 %v262
    %v1123 = vunpack.c.h.b16 %v262
    %v1124 = vunpack.c.l.b16 %v263
    %v1125 = vunpack.c.h.b16 %v263
    %v1126 = vunpack.c.l.b16 %v264
    %v1127 = vunpack.c.h.b16 %v264
    %v1128 = vunpack.c.l.b16 %v265
    %v1129 = vunpack.c.h.b16 %v265
    %v1130 = vunpack.c.l.b16 %v266
    %v1131 = vunpack.c.h.b16 %v266
    %v1132 = vunpack.c.l.b16 %v267
    %v1133 = vunpack.c.h.b16 %v267
    %v1134 = vunpack.c.l.b16 %v268
    %v1135 = vunpack.c.h.b16 %v268
    %v1136 = vunpack.c.l.b16 %v269
    %v1137 = vunpack.c.h.b16 %v269
    %v1138 = vunpack.c.l.b16 %v270
    %v1139 = vunpack.c.h.b16 %v270
    %v1140 = vunpack.c.l.b16 %v271
    %v1141 = vunpack.c.h.b16 %v271
    %v1142 = vunpack.c.l.b16 %v272
    %v1143 = vunpack.c.h.b16 %v272
    %v1144 = vunpack.c.l.b16 %v273
    %v1145 = vunpack.c.h.b16 %v273
    %v1146 = vunpack.c.l.b16 %v274
    %v1147 = vunpack.c.h.b16 %v274
    %v1148 = vunpack.c.l.b16 %v275
    %v1149 = vunpack.c.h.b16 %v275
    %v1150 = vunpack.c.l.b16 %v276
    %v1151 = vunpack.c.h.b16 %v276
    %v1152 = vunpack.c.l.b16 %v277
    %v1153 = vunpack.c.h.b16 %v277
    %v1154 = vunpack.c.l.b16 %v278
    %v1155 = vunpack.c.h.b16 %v278
    %v1156 = vunpack.c.l.b16 %v279
    %v1157 = vunpack.c.h.b16 %v279
    %v1158 = vunpack.c.l.b16 %v280
    %v1159 = vunpack.c.h.b16 %v280
    %v1160 = vunpack.c.l.b16 %v281
    %v1161 = vunpack.c.h.b16 %v281
    %v1162 = vunpack.c.l.b16 %v282
    %v1163 = vunpack.c.h.b16 %v282
    %v1164 = vunpack.c.l.b16 %v283
    %v1165 = vunpack.c.h.b16 %v283
    %v1166 = vunpack.c.l.b16 %v284
    %v1167 = vunpack.c.h.b16 %v284
    %v1168 = vunpack.c.l.b16 %v285
    %v1169 = vunpack.c.h.b16 %v285
    %v1170 = vunpack.c.l.b16 %v286
    %v1171 = vunpack.c.h.b16 %v286
    %v1172 = vunpack.c.l.b16 %v287
    %v1173 = vunpack.c.h.b16 %v287
    %v1174 = vunpack.c.l.b16 %v288
    %v1175 = vunpack.c.h.b16 %v288
    %v1176 = vunpack.c.l.b16 %v289
    %v1177 = vunpack.c.h.b16 %v289
    %v1178 = vunpack.c.l.b16 %v290
    %v1179 = vunpack.c.h.b16 %v290
    %v1180 = vunpack.c.l.b16 %v291
    %v1181 = vunpack.c.h.b16 %v291
    %v1182 = vunpack.c.l.b16 %v292
    %v1183 = vunpack.c.h.b16 %v292
    %v1184 = vunpack.c.l.b16 %v293
    %v1185 = vunpack.c.h.b16 %v293
    %v1186 = vunpack.c.l.b16 %v294
    %v1187 = vunpack.c.h.b16 %v294
    %v1188 = vunpack.c.l.b16 %v295
    %v1189 = vunpack.c.h.b16 %v295
    %v1190 = vunpack.c.l.b16 %v296
    %v1191 = vunpack.c.h.b16 %v296
    %v1192 = vunpack.c.l.b16 %v297
    %v1193 = vunpack.c.h.b16 %v297
    %v1194 = vunpack.c.l.b16 %v298
    %v1195 = vunpack.c.h.b16 %v298
    %v1196 = vunpack.c.l.b16 %v299
    %v1197 = vunpack.c.h.b16 %v299
    %v1198 = vunpack.c.l.b16 %v300
    %v1199 = vunpack.c.h.b16 %v300
    %v1200 = vunpack.c.l.b16 %v301
    %v1201 = vunpack.c.h.b16 %v301
    %v1202 = vunpack.c.l.b16 %v302
    %v1203 = vunpack.c.h.b16 %v302
    %v1204 = vunpack.c.l.b16 %v303
    %v1205 = vunpack.c.h.b16 %v303
    %v1206 = vunpack.c.l.b16 %v304
    %v1207 = vunpack.c.h.b16 %v304
    %v1208 = vunpack.c.l.b16 %v305
    %v1209 = vunpack.c.h.b16 %v305
    %v1210 = vunpack.c.l.b16 %v306
    %v1211 = vunpack.c.h.b16 %v306
    %v1212 = vunpack.c.l.b16 %v307
    %v1213 = vunpack.c.h.b16 %v307
    %v1214 = vunpack.c.l.b16 %v308
    %v1215 = vunpack.c.h.b16 %v308
    %v1216 = vunpack.c.l.b16 %v309
    %v1217 = vunpack.c.h.b16 %v309
    %v1218 = vunpack.c.l.b16 %v310
    %v1219 = vunpack.c.h.b16 %v310
    %v1220 = vunpack.c.l.b16 %v311
    %v1221 = vunpack.c.h.b16 %v311
    %v1222 = vunpack.c.l.b16 %v312
    %v1223 = vunpack.c.h.b16 %v312
    %v1224 = vunpack.c.l.b16 %v313
    %v1225 = vunpack.c.h.b16 %v313
    %v1226 = vunpack.c.l.b16 %v314
    %v1227 = vunpack.c.h.b16 %v314
    %v1228 = vunpack.c.l.b16 %v315
    %v1229 = vunpack.c.h.b16 %v315
    %v1230 = vunpack.c.l.b16 %v316
    %v1231 = vunpack.c.h.b16 %v316
    %v1232 = vunpack.c.l.b16 %v317
    %v1233 = vunpack.c.h.b16 %v317
    %v1234 = vunpack.c.l.b16 %v318
    %v1235 = vunpack.c.h.b16 %v318
    %v1236 = vunpack.c.l.b16 %v319
    %v1237 = vunpack.c.h.b16 %v319
    %v1238 = vunpack.c.l.b16 %v320
    %v1239 = vunpack.c.h.b16 %v320
    %v1240 = vunpack.c.l.b16 %v321
    %v1241 = vunpack.c.h.b16 %v321
    %v1242 = vunpack.c.l.b16 %v322
    %v1243 = vunpack.c.h.b16 %v322
    %v1244 = vunpack.c.l.b16 %v323
    %v1245 = vunpack.c.h.b16 %v323
    %v1246 = vunpack.c.l.b16 %v324
    %v1247 = vunpack.c.h.b16 %v324
    %v1248 = vunpack.c.l.b16 %v325
    %v1249 = vunpack.c.h.b16 %v325
    %v1250 = vunpack.c.l.b16 %v326
    %v1251 = vunpack.c.h.b16 %v326
    %v1252 = vunpack.c.l.b16 %v327
    %v1253 = vunpack.c.h.b16 %v327
    %v1254 = vunpack.c.l.b16 %v328
    %v1255 = vunpack.c.h.b16 %v328
    %v1256 = vunpack.c.l.b16 %v329
    %v1257 = vunpack.c.h.b16 %v329
    %v1258 = vunpack.c.l.b16 %v330
    %v1259 = vunpack.c.h.b16 %v330
    %v1260 = vunpack.c.l.b16 %v331
    %v1261 = vunpack.c.h.b16 %v331
    %v1262 = vunpack.c.l.b16 %v332
    %v1263 = vunpack.c.h.b16 %v332
    %v1264 = vunpack.c.l.b16 %v333
    %v1265 = vunpack.c.h.b16 %v333
    %v1266 = vunpack.c.l.b16 %v334
    %v1267 = vunpack.c.h.b16 %v334
    %v1268 = vunpack.c.l.b16 %v335
    %v1269 = vunpack.c.h.b16 %v335
    %v1270 = vunpack.c.l.b16 %v336
    %v1271 = vunpack.c.h.b16 %v336
    %v1272 = vunpack.c.l.b16 %v337
    %v1273 = vunpack.c.h.b16 %v337
    %v1274 = vunpack.c.l.b16 %v338
    %v1275 = vunpack.c.h.b16 %v338
    %v1276 = vunpack.c.l.b16 %v339
    %v1277 = vunpack.c.h.b16 %v339
    %v1278 = vunpack.c.l.b16 %v340
    %v1279 = vunpack.c.h.b16 %v340
    %v1280 = vunpack.c.l.b16 %v341
    %v1281 = vunpack.c.h.b16 %v341
    %v1282 = vunpack.c.l.b16 %v342
    %v1283 = vunpack.c.h.b16 %v342
    %v1284 = vunpack.c.l.b16 %v343
    %v1285 = vunpack.c.h.b16 %v343
    %v1286 = vunpack.c.l.b16 %v344
    %v1287 = vunpack.c.h.b16 %v344
    %v1288 = vunpack.c.l.b16 %v345
    %v1289 = vunpack.c.h.b16 %v345
    %v1290 = vunpack.c.l.b16 %v346
    %v1291 = vunpack.c.h.b16 %v346
    %v1292 = vunpack.c.l.b16 %v347
    %v1293 = vunpack.c.h.b16 %v347
    %v1294 = vunpack.c.l.b16 %v348
    %v1295 = vunpack.c.h.b16 %v348
    %v1296 = vunpack.c.l.b16 %v349
    %v1297 = vunpack.c.h.b16 %v349
    %v1298 = vunpack.c.l.b16 %v350
    %v1299 = vunpack.c.h.b16 %v350
    %v1300 = vunpack.c.l.b16 %v351
    %v1301 = vunpack.c.h.b16 %v351
    %v1302 = vunpack.c.l.b16 %v352
    %v1303 = vunpack.c.h.b16 %v352
    %v1304 = vunpack.c.l.b16 %v353
    %v1305 = vunpack.c.h.b16 %v353
    %v1306 = vunpack.c.l.b16 %v354
    %v1307 = vunpack.c.h.b16 %v354
    %v1308 = vunpack.c.l.b16 %v355
    %v1309 = vunpack.c.h.b16 %v355
    %v1310 = vunpack.c.l.b16 %v356
    %v1311 = vunpack.c.h.b16 %v356
    %v1312 = vpack.c.b16 %v728, %v720
    %v1313 = vpack.c.b16 %v729, %v721
    %v1314 = vpack.c.b16 %v730, %v722
    %v1315 = vpack.c.b16 %v731, %v723
    %v1316 = vpack.c.b16 %v732, %v724
    %v1317 = vpack.c.b16 %v733, %v725
    %v1318 = vpack.c.b16 %v734, %v726
    %v1319 = vpack.c.b16 %v735, %v727
    %v1320 = vpack.c.b16 %v744, %v736
    %v1321 = vpack.c.b16 %v745, %v737
    %v1322 = vpack.c.b16 %v746, %v738
    %v1323 = vpack.c.b16 %v747, %v739
    %v1324 = vpack.c.b16 %v748, %v740
    %v1325 = vpack.c.b16 %v749, %v741
    %v1326 = vpack.c.b16 %v750, %v742
    %v1327 = vpack.c.b16 %v751, %v743
    %v1328 = vpack.c.b16 %v760, %v752
    %v1329 = vpack.c.b16 %v761, %v753
    %v1330 = vpack.c.b16 %v762, %v754
    %v1331 = vpack.c.b16 %v763, %v755
    %v1332 = vpack.c.b16 %v764, %v756
    %v1333 = vpack.c.b16 %v765, %v757
    %v1334 = vpack.c.b16 %v766, %v758
    %v1335 = vpack.c.b16 %v767, %v759
    %v1336 = vpack.c.b16 %v776, %v768
    %v1337 = vpack.c.b16 %v777, %v769
    %v1338 = vpack.c.b16 %v778, %v770
    %v1339 = vpack.c.b16 %v779, %v771
    %v1340 = vpack.c.b16 %v780, %v772
    %v1341 = vpack.c.b16 %v781, %v773
    %v1342 = vpack.c.b16 %v782, %v774
    %v1343 = vpack.c.b16 %v783, %v775
    %v1344 = vpack.c.b16 %v792, %v784
    %v1345 = vpack.c.b16 %v793, %v785
    %v1346 = vpack.c.b16 %v794, %v786
    %v1347 = vpack.c.b16 %v795, %v787
    %v1348 = vpack.c.b16 %v796, %v788
    %v1349 = vpack.c.b16 %v797, %v789
    %v1350 = vpack.c.b16 %v798, %v790
    %v1351 = vpack.c.b16 %v799, %v791
    %v1352 = vpack.c.b16 %v808, %v800
    %v1353 = vpack.c.b16 %v809, %v801
    %v1354 = vpack.c.b16 %v810, %v802
    %v1355 = vpack.c.b16 %v811, %v803
    %v1356 = vpack.c.b16 %v812, %v804
    %v1357 = vpack.c.b16 %v813, %v805
    %v1358 = vpack.c.b16 %v814, %v806
    %v1359 = vpack.c.b16 %v815, %v807
    %v1360 = vpack.c.b16 %v824, %v816
    %v1361 = vpack.c.b16 %v825, %v817
    %v1362 = vpack.c.b16 %v826, %v818
    %v1363 = vpack.c.b16 %v827, %v819
    %v1364 = vpack.c.b16 %v828, %v820
    %v1365 = vpack.c.b16 %v829, %v821
    %v1366 = vpack.c.b16 %v830, %v822
    %v1367 = vpack.c.b16 %v831, %v823
    %v1368 = vpack.c.b16 %v840, %v832
    %v1369 = vpack.c.b16 %v841, %v833
    %v1370 = vpack.c.b16 %v842, %v834
    %v1371 = vpack.c.b16 %v843, %v835
    %v1372 = vpack.c.b16 %v844, %v836
    %v1373 = vpack.c.b16 %v845, %v837
    %v1374 = vpack.c.b16 %v846, %v838
    %v1375 = vpack.c.b16 %v847, %v839
    %v1376 = vpack.c.b16 %v856, %v848
    %v1377 = vpack.c.b16 %v857, %v849
    %v1378 = vpack.c.b16 %v858, %v850
    %v1379 = vpack.c.b16 %v859, %v851
    %v1380 = vpack.c.b16 %v860, %v852
    %v1381 = vpack.c.b16 %v861, %v853
    %v1382 = vpack.c.b16 %v862, %v854
    %v1383 = vpack.c.b16 %v863, %v855
    %v1384 = vpack.c.b16 %v872, %v864
    %v1385 = vpack.c.b16 %v873, %v865
    %v1386 = vpack.c.b16 %v874, %v866
    %v1387 = vpack.c.b16 %v875, %v867
    %v1388 = vpack.c.b16 %v876, %v868
    %v1389 = vpack.c.b16 %v877, %v869
    %v1390 = vpack.c.b16 %v878, %v870
    %v1391 = vpack.c.b16 %v879, %v871
    %v1392 = vpack.c.b16 %v888, %v880
    %v1393 = vpack.c.b16 %v889, %v881
    %v1394 = vpack.c.b16 %v890, %v882
    %v1395 = vpack.c.b16 %v891, %v883
    %v1396 = vpack.c.b16 %v892, %v884
    %v1397 = vpack.c.b16 %v893, %v885
    %v1398 = vpack.c.b16 %v894, %v886
    %v1399 = vpack.c.b16 %v895, %v887
    %v1400 = vpack.c.b16 %v904, %v896
    %v1401 = vpack.c.b16 %v905, %v897
    %v1402 = vpack.c.b16 %v906, %v898
    %v1403 = vpack.c.b16 %v907, %v899
    %v1404 = vpack.c.b16 %v908, %v900
    %v1405 = vpack.c.b16 %v909, %v901
    %v1406 = vpack.c.b16 %v910, %v902
    %v1407 = vpack.c.b16 %v911, %v903
    %v1408 = vpack.c.b16 %v920, %v912
    %v1409 = vpack.c.b16 %v921, %v913
    %v1410 = vpack.c.b16 %v922, %v914
    %v1411 = vpack.c.b16 %v923, %v915
    %v1412 = vpack.c.b16 %v924, %v916
    %v1413 = vpack.c.b16 %v925, %v917
    %v1414 = vpack.c.b16 %v926, %v918
    %v1415 = vpack.c.b16 %v927, %v919
    %v1416 = vpack.c.b16 %v936, %v928
    %v1417 = vpack.c.b16 %v937, %v929
    %v1418 = vpack.c.b16 %v938, %v930
    %v1419 = vpack.c.b16 %v939, %v931
    %v1420 = vpack.c.b16 %v940, %v932
    %v1421 = vpack.c.b16 %v941, %v933
    %v1422 = vpack.c.b16 %v942, %v934
    %v1423 = vpack.c.b16 %v943, %v935
    %v1424 = vpack.c.b16 %v952, %v944
    %v1425 = vpack.c.b16 %v953, %v945
    %v1426 = vpack.c.b16 %v954, %v946
    %v1427 = vpack.c.b16 %v955, %v947
    %v1428 = vpack.c.b16 %v956, %v948
    %v1429 = vpack.c.b16 %v957, %v949
    %v1430 = vpack.c.b16 %v958, %v950
    %v1431 = vpack.c.b16 %v959, %v951
    %v1432 = vpack.c.b16 %v968, %v960
    %v1433 = vpack.c.b16 %v969, %v961
    %v1434 = vpack.c.b16 %v970, %v962
    %v1435 = vpack.c.b16 %v971, %v963
    %v1436 = vpack.c.b16 %v972, %v964
    %v1437 = vpack.c.b16 %v973, %v965
    %v1438 = vpack.c.b16 %v974, %v966
    %v1439 = vpack.c.b16 %v975, %v967
    %v1440 = vpack.c.b16 %v984, %v976
    %v1441 = vpack.c.b16 %v985, %v977
    %v1442 = vpack.c.b16 %v986, %v978
    %v1443 = vpack.c.b16 %v987, %v979
    %v1444 = vpack.c.b16 %v988, %v980
    %v1445 = vpack.c.b16 %v989, %v981
    %v1446 = vpack.c.b16 %v990, %v982
    %v1447 = vpack.c.b16 %v991, %v983
    %v1448 = vpack.c.b16 %v1000, %v992
    %v1449 = vpack.c.b16 %v1001, %v993
    %v1450 = vpack.c.b16 %v1002, %v994
    %v1451 = vpack.c.b16 %v1003, %v995
    %v1452 = vpack.c.b16 %v1004, %v996
    %v1453 = vpack.c.b16 %v1005, %v997
    %v1454 = vpack.c.b16 %v1006, %v998
    %v1455 = vpack.c.b16 %v1007, %v999
    %v1456 = vpack.c.b16 %v1016, %v1008
    %v1457 = vpack.c.b16 %v1017, %v1009
    %v1458 = vpack.c.b16 %v1018, %v1010
    %v1459 = vpack.c.b16 %v1019, %v1011
    %v1460 = vpack.c.b16 %v1020, %v1012
    %v1461 = vpack.c.b16 %v1021, %v1013
    %v1462 = vpack.c.b16 %v1022, %v1014
    %v1463 = vpack.c.b16 %v1023, %v1015
    %v1464 = vpack.c.b16 %v1032, %v1024
    %v1465 = vpack.c.b16 %v1033, %v1025
    %v1466 = vpack.c.b16 %v1034, %v1026
    %v1467 = vpack.c.b16 %v1035, %v1027
    %v1468 = vpack.c.b16 %v1036, %v1028
    %v1469 = vpack.c.b16 %v1037, %v1029
    %v1470 = vpack.c.b16 %v1038, %v1030
    %v1471 = vpack.c.b16 %v1039, %v1031
    %v1472 = vpack.c.b16 %v1048, %v1040
    %v1473 = vpack.c.b16 %v1049, %v1041
    %v1474 = vpack.c.b16 %v1050, %v1042
    %v1475 = vpack.c.b16 %v1051, %v1043
    %v1476 = vpack.c.b16 %v1052, %v1044
    %v1477 = vpack.c.b16 %v1053, %v1045
    %v1478 = vpack.c.b16 %v1054, %v1046
    %v1479 = vpack.c.b16 %v1055, %v1047
    %v1480 = vpack.c.b16 %v1064, %v1056
    %v1481 = vpack.c.b16 %v1065, %v1057
    %v1482 = vpack.c.b16 %v1066, %v1058
    %v1483 = vpack.c.b16 %v1067, %v1059
    %v1484 = vpack.c.b16 %v1068, %v1060
    %v1485 = vpack.c.b16 %v1069, %v1061
    %v1486 = vpack.c.b16 %v1070, %v1062
    %v1487 = vpack.c.b16 %v1071, %v1063
    %v1488 = vpack.c.b16 %v1080, %v1072
    %v1489 = vpack.c.b16 %v1081, %v1073
    %v1490 = vpack.c.b16 %v1082, %v1074
    %v1491 = vpack.c.b16 %v1083, %v1075
    %v1492 = vpack.c.b16 %v1084, %v1076
    %v1493 = vpack.c.b16 %v1085, %v1077
    %v1494 = vpack.c.b16 %v1086, %v1078
    %v1495 = vpack.c.b16 %v1087, %v1079
    %v1496 = vpack.c.b16 %v1096, %v1088
    %v1497 = vpack.c.b16 %v1097, %v1089
    %v1498 = vpack.c.b16 %v1098, %v1090
    %v1499 = vpack.c.b16 %v1099, %v1091
    %v1500 = vpack.c.b16 %v1100, %v1092
    %v1501 = vpack.c.b16 %v1101, %v1093
    %v1502 = vpack.c.b16 %v1102, %v1094
    %v1503 = vpack.c.b16 %v1103, %v1095
    %v1504 = vpack.c.b16 %v1112, %v1104
    %v1505 = vpack.c.b16 %v1113, %v1105
    %v1506 = vpack.c.b16 %v1114, %v1106
    %v1507 = vpack.c.b16 %v1115, %v1107
    %v1508 = vpack.c.b16 %v1116, %v1108
    %v1509 = vpack.c.b16 %v1117, %v1109
    %v1510 = vpack.c.b16 %v1118, %v1110
    %v1511 = vpack.c.b16 %v1119, %v1111
    %v1512 = vpack.c.b16 %v1128, %v1120
    %v1513 = vpack.c.b16 %v1129, %v1121
    %v1514 = vpack.c.b16 %v1130, %v1122
    %v1515 = vpack.c.b16 %v1131, %v1123
    %v1516 = vpack.c.b16 %v1132, %v1124
    %v1517 = vpack.c.b16 %v1133, %v1125
    %v1518 = vpack.c.b16 %v1134, %v1126
    %v1519 = vpack.c.b16 %v1135, %v1127
    %v1520 = vpack.c.b16 %v1144, %v1136
    %v1521 = vpack.c.b16 %v1145, %v1137
    %v1522 = vpack.c.b16 %v1146, %v1138
    %v1523 = vpack.c.b16 %v1147, %v1139
    %v1524 = vpack.c.b16 %v1148, %v1140
    %v1525 = vpack.c.b16 %v1149, %v1141
    %v1526 = vpack.c.b16 %v1150, %v1142
    %v1527 = vpack.c.b16 %v1151, %v1143
    %v1528 = vpack.c.b16 %v1160, %v1152
    %v1529 = vpack.c.b16 %v1161, %v1153
    %v1530 = vpack.c.b16 %v1162, %v1154
    %v1531 = vpack.c.b16 %v1163, %v1155
    %v1532 = vpack.c.b16 %v1164, %v1156
    %v1533 = vpack.c.b16 %v1165, %v1157
    %v1534 = vpack.c.b16 %v1166, %v1158
    %v1535 = vpack.c.b16 %v1167, %v1159
    %v1536 = vpack.c.b16 %v1176, %v1168
    %v1537 = vpack.c.b16 %v1177, %v1169
    %v1538 = vpack.c.b16 %v1178, %v1170
    %v1539 = vpack.c.b16 %v1179, %v1171
    %v1540 = vpack.c.b16 %v1180, %v1172
    %v1541 = vpack.c.b16 %v1181, %v1173
    %v1542 = vpack.c.b16 %v1182, %v1174
    %v1543 = vpack.c.b16 %v1183, %v1175
    %v1544 = vpack.c.b16 %v1192, %v1184
    %v1545 = vpack.c.b16 %v1193, %v1185
    %v1546 = vpack.c.b16 %v1194, %v1186
    %v1547 = vpack.c.b16 %v1195, %v1187
    %v1548 = vpack.c.b16 %v1196, %v1188
    %v1549 = vpack.c.b16 %v1197, %v1189
    %v1550 = vpack.c.b16 %v1198, %v1190
    %v1551 = vpack.c.b16 %v1199, %v1191
    %v1552 = vpack.c.b16 %v1208, %v1200
    %v1553 = vpack.c.b16 %v1209, %v1201
    %v1554 = vpack.c.b16 %v1210, %v1202
    %v1555 = vpack.c.b16 %v1211, %v1203
    %v1556 = vpack.c.b16 %v1212, %v1204
    %v1557 = vpack.c.b16 %v1213, %v1205
    %v1558 = vpack.c.b16 %v1214, %v1206
    %v1559 = vpack.c.b16 %v1215, %v1207
    %v1560 = vpack.c.b16 %v1224, %v1216
    %v1561 = vpack.c.b16 %v1225, %v1217
    %v1562 = vpack.c.b16 %v1226, %v1218
    %v1563 = vpack.c.b16 %v1227, %v1219
    %v1564 = vpack.c.b16 %v1228, %v1220
    %v1565 = vpack.c.b16 %v1229, %v1221
    %v1566 = vpack.c.b16 %v1230, %v1222
    %v1567 = vpack.c.b16 %v1231, %v1223
    %v1568 = vpack.c.b16 %v1240, %v1232
    %v1569 = vpack.c.b16 %v1241, %v1233
    %v1570 = vpack.c.b16 %v1242, %v1234
    %v1571 = vpack.c.b16 %v1243, %v1235
    %v1572 = vpack.c.b16 %v1244, %v1236
    %v1573 = vpack.c.b16 %v1245, %v1237
    %v1574 = vpack.c.b16 %v1246, %v1238
    %v1575 = vpack.c.b16 %v1247, %v1239
    %v1576 = vpack.c.b16 %v1256, %v1248
    %v1577 = vpack.c.b16 %v1257, %v1249
    %v1578 = vpack.c.b16 %v1258, %v1250
    %v1579 = vpack.c.b16 %v1259, %v1251
    %v1580 = vpack.c.b16 %v1260, %v1252
    %v1581 = vpack.c.b16 %v1261, %v1253
    %v1582 = vpack.c.b16 %v1262, %v1254
    %v1583 = vpack.c.b16 %v1263, %v1255
    %v1584 = vpack.c.b16 %v1272, %v1264
    %v1585 = vpack.c.b16 %v1273, %v1265
    %v1586 = vpack.c.b16 %v1274, %v1266
    %v1587 = vpack.c.b16 %v1275, %v1267
    %v1588 = vpack.c.b16 %v1276, %v1268
    %v1589 = vpack.c.b16 %v1277, %v1269
    %v1590 = vpack.c.b16 %v1278, %v1270
    %v1591 = vpack.c.b16 %v1279, %v1271
    %v1592 = vpack.c.b16 %v1288, %v1280
    %v1593 = vpack.c.b16 %v1289, %v1281
    %v1594 = vpack.c.b16 %v1290, %v1282
    %v1595 = vpack.c.b16 %v1291, %v1283
    %v1596 = vpack.c.b16 %v1292, %v1284
    %v1597 = vpack.c.b16 %v1293, %v1285
    %v1598 = vpack.c.b16 %v1294, %v1286
    %v1599 = vpack.c.b16 %v1295, %v1287
    %v1600 = vpack.c.b16 %v1304, %v1296
    %v1601 = vpack.c.b16 %v1305, %v1297
    %v1602 = vpack.c.b16 %v1306, %v1298
    %v1603 = vpack.c.b16 %v1307, %v1299
    %v1604 = vpack.c.b16 %v1308, %v1300
    %v1605 = vpack.c.b16 %v1309, %v1301
    %v1606 = vpack.c.b16 %v1310, %v1302
    %v1607 = vpack.c.b16 %v1311, %v1303
    %vm1896 = vcmask 621568
    %v1898 = vsel %vm1896, %v419, 0
    %vm1900 = vcmask 1045504
    %v1902 = vsel %vm1900, %v1600, 0
    %v1905 = vsel %vm1900, %v1601, 0
    %v1908 = vsel %vm1900, %v1602, 0
    %v1911 = vsel %vm1900, %v1603, 0
    %v1914 = vsel %vm1900, %v1604, 0
    %v1917 = vsel %vm1900, %v1605, 0
    %v1920 = vsel %vm1900, %v1606, 0
    %v1923 = vsel %vm1900, %v1607, 0
    %1925 = vmatprep.subr.bf16.mxu0 %v1313
    %1926 = vmatpush1.bf16.msra.mxu0 %v1312
    %1927 = vmatprep.subr.bf16.mxu0 %v1321
    %1928 = vmatpush1.bf16.msra.mxu0 %v1320
    %1929 = vmatprep.subr.bf16.mxu0 %v1329
    %1930 = vmatpush1.bf16.msra.mxu0 %v1328
    %1931 = vmatprep.subr.bf16.mxu0 %v1337
    %1932 = vmatpush1.bf16.msra.mxu0 %v1336
    %1933 = vmatprep.subr.bf16.mxu0 %v1345
    %1934 = vmatpush1.bf16.msra.mxu0 %v1344
    %1935 = vmatprep.subr.bf16.mxu0 %v1353
    %1936 = vmatpush1.bf16.msra.mxu0 %v1352
    %1937 = vmatprep.subr.bf16.mxu0 %v1361
    %1938 = vmatpush1.bf16.msra.mxu0 %v1360
    %1939 = vmatprep.subr.bf16.mxu0 %v1369
    %1940 = vmatpush1.bf16.msra.mxu0 %v1368
    %1941 = vmatprep.subr.bf16.mxu0 %v1377
    %1942 = vmatpush1.bf16.msra.mxu0 %v1376
    %1943 = vmatprep.subr.bf16.mxu0 %v1385
    %1944 = vmatpush1.bf16.msra.mxu0 %v1384
    %1945 = vmatprep.subr.bf16.mxu0 %v1393
    %1946 = vmatpush1.bf16.msra.mxu0 %v1392
    %1947 = vmatprep.subr.bf16.mxu0 %v1401
    %1948 = vmatpush1.bf16.msra.mxu0 %v1400
    %1949 = vmatprep.subr.bf16.mxu0 %v1409
    %1950 = vmatpush1.bf16.msra.mxu0 %v1408
    %1951 = vmatprep.subr.bf16.mxu0 %v1417
    %1952 = vmatpush1.bf16.msra.mxu0 %v1416
    %1953 = vmatprep.subr.bf16.mxu0 %v1425
    %1954 = vmatpush1.bf16.msra.mxu0 %v1424
    %1955 = vmatprep.subr.bf16.mxu0 %v1433
    %1956 = vmatpush1.bf16.msra.mxu0 %v1432
    %1957 = vmatprep.mubr.bf16.mxu0 %v416
    %1958 = vmatmul.mubr.bf16.gmra.mrb[0].mxu0 %v415
    %v1959 = vpop.f32.mrb[0].mxu0
    %v1960 = vadd.f32 %v362, %v1959
    %v1961 = vpop.f32.mrb[0].mxu0
    %v1962 = vadd.f32 %v366, %v1961
    %v1963 = vpop.f32.mrb[0].mxu0
    %v1964 = vadd.f32 %v362, %v1963
    %v1965 = vpop.f32.mrb[0].mxu0
    %v1966 = vadd.f32 %v366, %v1965
    %1967 = vdwg.mxu0
    %1968 = vmatprep.subr.bf16.mxu0 %v1441
    %1969 = vmatpush1.bf16.msra.mxu0 %v1440
    %1970 = vmatprep.subr.bf16.mxu0 %v1449
    %1971 = vmatpush1.bf16.msra.mxu0 %v1448
    %1972 = vmatprep.subr.bf16.mxu0 %v1457
    %1973 = vmatpush1.bf16.msra.mxu0 %v1456
    %1974 = vmatprep.subr.bf16.mxu0 %v1465
    %1975 = vmatpush1.bf16.msra.mxu0 %v1464
    %1976 = vmatprep.subr.bf16.mxu0 %v1473
    %1977 = vmatpush1.bf16.msra.mxu0 %v1472
    %1978 = vmatprep.subr.bf16.mxu0 %v1481
    %1979 = vmatpush1.bf16.msra.mxu0 %v1480
    %1980 = vmatprep.subr.bf16.mxu0 %v1489
    %1981 = vmatpush1.bf16.msra.mxu0 %v1488
    %1982 = vmatprep.subr.bf16.mxu0 %v1497
    %1983 = vmatpush1.bf16.msra.mxu0 %v1496
    %1984 = vmatprep.subr.bf16.mxu0 %v1505
    %1985 = vmatpush1.bf16.msra.mxu0 %v1504
    %1986 = vmatprep.subr.bf16.mxu0 %v1513
    %1987 = vmatpush1.bf16.msra.mxu0 %v1512
    %1988 = vmatprep.subr.bf16.mxu0 %v1521
    %1989 = vmatpush1.bf16.msra.mxu0 %v1520
    %1990 = vmatprep.subr.bf16.mxu0 %v1529
    %1991 = vmatpush1.bf16.msra.mxu0 %v1528
    %1992 = vmatprep.subr.bf16.mxu0 %v1537
    %1993 = vmatpush1.bf16.msra.mxu0 %v1536
    %1994 = vmatprep.subr.bf16.mxu0 %v1545
    %1995 = vmatpush1.bf16.msra.mxu0 %v1544
    %1996 = vmatprep.subr.bf16.mxu0 %v1553
    %1997 = vmatpush1.bf16.msra.mxu0 %v1552
    %1998 = vmatprep.subr.bf16.mxu0 %v1561
    %1999 = vmatpush1.bf16.msra.mxu0 %v1560
    %2000 = vmatprep.mubr.bf16.mxu0 %v418
    %2001 = vmatmul.mubr.bf16.gmra.mrb[0].mxu0 %v417
    %v2002 = vpop.f32.mrb[0].mxu0
    %v2003 = vadd.f32 %v1960, %v2002
    %v2004 = vpop.f32.mrb[0].mxu0
    %v2005 = vadd.f32 %v1962, %v2004
    %v2006 = vpop.f32.mrb[0].mxu0
    %v2007 = vadd.f32 %v1964, %v2006
    %v2008 = vpop.f32.mrb[0].mxu0
    %v2009 = vadd.f32 %v1966, %v2008
    %2010 = vdwg.mxu0
    %2011 = vmatprep.subr.bf16.mxu0 %v1569
    %2012 = vmatpush1.bf16.msra.mxu0 %v1568
    %2013 = vmatprep.subr.bf16.mxu0 %v1577
    %2014 = vmatpush1.bf16.msra.mxu0 %v1576
    %2015 = vmatprep.subr.bf16.mxu0 %v1585
    %2016 = vmatpush1.bf16.msra.mxu0 %v1584
    %2017 = vmatprep.subr.bf16.mxu0 %v1593
    %2018 = vmatpush1.bf16.msra.mxu0 %v1592
    %2019 = vmatprep.subr.bf16.mxu0 %v1905
    %2020 = vmatpush1.bf16.msra.mxu0 %v1902
    %2021 = vmatprep.subr.bf16.mxu0 0
    %2022 = vmatpush1.bf16.msra.mxu0 0
    %2023 = vmatprep.subr.bf16.mxu0 0
    %2024 = vmatpush1.bf16.msra.mxu0 0
    %2025 = vmatprep.subr.bf16.mxu0 0
    %2026 = vmatpush1.bf16.msra.mxu0 0
    %2027 = vmatprep.subr.bf16.mxu0 0
    %2028 = vmatpush1.bf16.msra.mxu0 0
    %2029 = vmatprep.subr.bf16.mxu0 0
    %2030 = vmatpush1.bf16.msra.mxu0 0
    %2031 = vmatprep.subr.bf16.mxu0 0
    %2032 = vmatpush1.bf16.msra.mxu0 0
    %2033 = vmatprep.subr.bf16.mxu0 0
    %2034 = vmatpush1.bf16.msra.mxu0 0
    %2035 = vmatprep.subr.bf16.mxu0 0
    %2036 = vmatpush1.bf16.msra.mxu0 0
    %2037 = vmatprep.subr.bf16.mxu0 0
    %2038 = vmatpush1.bf16.msra.mxu0 0
    %2039 = vmatprep.subr.bf16.mxu0 0
    %2040 = vmatpush1.bf16.msra.mxu0 0
    %2041 = vmatprep.subr.bf16.mxu0 0
    %2042 = vmatpush1.bf16.msra.mxu0 0
    %2043 = vmatprep.mubr.bf16.mxu0 0
    %2044 = vmatmul.mubr.bf16.gmra.mrb[0].mxu0 %v1898
    %v2045 = vpop.f32.mrb[0].mxu0
    %v2046 = vadd.f32 %v2003, %v2045
    %v2047 = vpop.f32.mrb[0].mxu0
    %v2048 = vadd.f32 %v2005, %v2047
    %v2049 = vpop.f32.mrb[0].mxu0
    %v2050 = vadd.f32 %v2007, %v2049
    %v2051 = vpop.f32.mrb[0].mxu0
    %v2052 = vadd.f32 %v2009, %v2051
    %2053 = vdwg.mxu0
    %2054 = vmatprep.subr.bf16.mxu0 %v1315
    %2055 = vmatpush1.bf16.msra.mxu0 %v1314
    %2056 = vmatprep.subr.bf16.mxu0 %v1323
    %2057 = vmatpush1.bf16.msra.mxu0 %v1322
    %2058 = vmatprep.subr.bf16.mxu0 %v1331
    %2059 = vmatpush1.bf16.msra.mxu0 %v1330
    %2060 = vmatprep.subr.bf16.mxu0 %v1339
    %2061 = vmatpush1.bf16.msra.mxu0 %v1338
    %2062 = vmatprep.subr.bf16.mxu0 %v1347
    %2063 = vmatpush1.bf16.msra.mxu0 %v1346
    %2064 = vmatprep.subr.bf16.mxu0 %v1355
    %2065 = vmatpush1.bf16.msra.mxu0 %v1354
    %2066 = vmatprep.subr.bf16.mxu0 %v1363
    %2067 = vmatpush1.bf16.msra.mxu0 %v1362
    %2068 = vmatprep.subr.bf16.mxu0 %v1371
    %2069 = vmatpush1.bf16.msra.mxu0 %v1370
    %2070 = vmatprep.subr.bf16.mxu0 %v1379
    %2071 = vmatpush1.bf16.msra.mxu0 %v1378
    %2072 = vmatprep.subr.bf16.mxu0 %v1387
    %2073 = vmatpush1.bf16.msra.mxu0 %v1386
    %2074 = vmatprep.subr.bf16.mxu0 %v1395
    %2075 = vmatpush1.bf16.msra.mxu0 %v1394
    %2076 = vmatprep.subr.bf16.mxu0 %v1403
    %2077 = vmatpush1.bf16.msra.mxu0 %v1402
    %2078 = vmatprep.subr.bf16.mxu0 %v1411
    %2079 = vmatpush1.bf16.msra.mxu0 %v1410
    %2080 = vmatprep.subr.bf16.mxu0 %v1419
    %2081 = vmatpush1.bf16.msra.mxu0 %v1418
    %2082 = vmatprep.subr.bf16.mxu0 %v1427
    %2083 = vmatpush1.bf16.msra.mxu0 %v1426
    %2084 = vmatprep.subr.bf16.mxu0 %v1435
    %2085 = vmatpush1.bf16.msra.mxu0 %v1434
    %2086 = vmatprep.mubr.bf16.mxu0 %v416
    %2087 = vmatmul.mubr.bf16.gmra.mrb[0].mxu0 %v415
    %v2088 = vpop.f32.mrb[0].mxu0
    %v2089 = vadd.f32 %v370, %v2088
    %v2090 = vpop.f32.mrb[0].mxu0
    %v2091 = vadd.f32 %v374, %v2090
    %v2092 = vpop.f32.mrb[0].mxu0
    %v2093 = vadd.f32 %v370, %v2092
    %v2094 = vpop.f32.mrb[0].mxu0
    %v2095 = vadd.f32 %v374, %v2094
    %2096 = vdwg.mxu0
    %2097 = vmatprep.subr.bf16.mxu0 %v1443
    %2098 = vmatpush1.bf16.msra.mxu0 %v1442
    %2099 = vmatprep.subr.bf16.mxu0 %v1451
    %2100 = vmatpush1.bf16.msra.mxu0 %v1450
    %2101 = vmatprep.subr.bf16.mxu0 %v1459
    %2102 = vmatpush1.bf16.msra.mxu0 %v1458
    %2103 = vmatprep.subr.bf16.mxu0 %v1467
    %2104 = vmatpush1.bf16.msra.mxu0 %v1466
    %2105 = vmatprep.subr.bf16.mxu0 %v1475
    %2106 = vmatpush1.bf16.msra.mxu0 %v1474
    %2107 = vmatprep.subr.bf16.mxu0 %v1483
    %2108 = vmatpush1.bf16.msra.mxu0 %v1482
    %2109 = vmatprep.subr.bf16.mxu0 %v1491
    %2110 = vmatpush1.bf16.msra.mxu0 %v1490
    %2111 = vmatprep.subr.bf16.mxu0 %v1499
    %2112 = vmatpush1.bf16.msra.mxu0 %v1498
    %2113 = vmatprep.subr.bf16.mxu0 %v1507
    %2114 = vmatpush1.bf16.msra.mxu0 %v1506
    %2115 = vmatprep.subr.bf16.mxu0 %v1515
    %2116 = vmatpush1.bf16.msra.mxu0 %v1514
    %2117 = vmatprep.subr.bf16.mxu0 %v1523
    %2118 = vmatpush1.bf16.msra.mxu0 %v1522
    %2119 = vmatprep.subr.bf16.mxu0 %v1531
    %2120 = vmatpush1.bf16.msra.mxu0 %v1530
    %2121 = vmatprep.subr.bf16.mxu0 %v1539
    %2122 = vmatpush1.bf16.msra.mxu0 %v1538
    %2123 = vmatprep.subr.bf16.mxu0 %v1547
    %2124 = vmatpush1.bf16.msra.mxu0 %v1546
    %2125 = vmatprep.subr.bf16.mxu0 %v1555
    %2126 = vmatpush1.bf16.msra.mxu0 %v1554
    %2127 = vmatprep.subr.bf16.mxu0 %v1563
    %2128 = vmatpush1.bf16.msra.mxu0 %v1562
    %2129 = vmatprep.mubr.bf16.mxu0 %v418
    %2130 = vmatmul.mubr.bf16.gmra.mrb[0].mxu0 %v417
    %v2131 = vpop.f32.mrb[0].mxu0
    %v2132 = vadd.f32 %v2089, %v2131
    %v2133 = vpop.f32.mrb[0].mxu0
    %v2134 = vadd.f32 %v2091, %v2133
    %v2135 = vpop.f32.mrb[0].mxu0
    %v2136 = vadd.f32 %v2093, %v2135
    %v2137 = vpop.f32.mrb[0].mxu0
    %v2138 = vadd.f32 %v2095, %v2137
    %2139 = vdwg.mxu0
    %2140 = vmatprep.subr.bf16.mxu0 %v1571
    %2141 = vmatpush1.bf16.msra.mxu0 %v1570
    %2142 = vmatprep.subr.bf16.mxu0 %v1579
    %2143 = vmatpush1.bf16.msra.mxu0 %v1578
    %2144 = vmatprep.subr.bf16.mxu0 %v1587
    %2145 = vmatpush1.bf16.msra.mxu0 %v1586
    %2146 = vmatprep.subr.bf16.mxu0 %v1595
    %2147 = vmatpush1.bf16.msra.mxu0 %v1594
    %2148 = vmatprep.subr.bf16.mxu0 %v1911
    %2149 = vmatpush1.bf16.msra.mxu0 %v1908
    %2150 = vmatprep.subr.bf16.mxu0 0
    %2151 = vmatpush1.bf16.msra.mxu0 0
    %2152 = vmatprep.subr.bf16.mxu0 0
    %2153 = vmatpush1.bf16.msra.mxu0 0
    %2154 = vmatprep.subr.bf16.mxu0 0
    %2155 = vmatpush1.bf16.msra.mxu0 0
    %2156 = vmatprep.subr.bf16.mxu0 0
    %2157 = vmatpush1.bf16.msra.mxu0 0
    %2158 = vmatprep.subr.bf16.mxu0 0
    %2159 = vmatpush1.bf16.msra.mxu0 0
    %2160 = vmatprep.subr.bf16.mxu0 0
    %2161 = vmatpush1.bf16.msra.mxu0 0
    %2162 = vmatprep.subr.bf16.mxu0 0
    %2163 = vmatpush1.bf16.msra.mxu0 0
    %2164 = vmatprep.subr.bf16.mxu0 0
    %2165 = vmatpush1.bf16.msra.mxu0 0
    %2166 = vmatprep.subr.bf16.mxu0 0
    %2167 = vmatpush1.bf16.msra.mxu0 0
    %2168 = vmatprep.subr.bf16.mxu0 0
    %2169 = vmatpush1.bf16.msra.mxu0 0
    %2170 = vmatprep.subr.bf16.mxu0 0
    %2171 = vmatpush1.bf16.msra.mxu0 0
    %2172 = vmatprep.mubr.bf16.mxu0 0
    %2173 = vmatmul.mubr.bf16.gmra.mrb[0].mxu0 %v1898
    %v2174 = vpop.f32.mrb[0].mxu0
    %v2175 = vadd.f32 %v2132, %v2174
    %v2176 = vpop.f32.mrb[0].mxu0
    %v2177 = vadd.f32 %v2134, %v2176
    %v2178 = vpop.f32.mrb[0].mxu0
    %v2179 = vadd.f32 %v2136, %v2178
    %v2180 = vpop.f32.mrb[0].mxu0
    %v2181 = vadd.f32 %v2138, %v2180
    %2182 = vdwg.mxu0
    %2183 = vmatprep.subr.bf16.mxu0 %v1317
    %2184 = vmatpush1.bf16.msra.mxu0 %v1316
    %2185 = vmatprep.subr.bf16.mxu0 %v1325
    %2186 = vmatpush1.bf16.msra.mxu0 %v1324
    %2187 = vmatprep.subr.bf16.mxu0 %v1333
    %2188 = vmatpush1.bf16.msra.mxu0 %v1332
    %2189 = vmatprep.subr.bf16.mxu0 %v1341
    %2190 = vmatpush1.bf16.msra.mxu0 %v1340
    %2191 = vmatprep.subr.bf16.mxu0 %v1349
    %2192 = vmatpush1.bf16.msra.mxu0 %v1348
    %2193 = vmatprep.subr.bf16.mxu0 %v1357
    %2194 = vmatpush1.bf16.msra.mxu0 %v1356
    %2195 = vmatprep.subr.bf16.mxu0 %v1365
    %2196 = vmatpush1.bf16.msra.mxu0 %v1364
    %2197 = vmatprep.subr.bf16.mxu0 %v1373
    %2198 = vmatpush1.bf16.msra.mxu0 %v1372
    %2199 = vmatprep.subr.bf16.mxu0 %v1381
    %2200 = vmatpush1.bf16.msra.mxu0 %v1380
    %2201 = vmatprep.subr.bf16.mxu0 %v1389
    %2202 = vmatpush1.bf16.msra.mxu0 %v1388
    %2203 = vmatprep.subr.bf16.mxu0 %v1397
    %2204 = vmatpush1.bf16.msra.mxu0 %v1396
    %2205 = vmatprep.subr.bf16.mxu0 %v1405
    %2206 = vmatpush1.bf16.msra.mxu0 %v1404
    %2207 = vmatprep.subr.bf16.mxu0 %v1413
    %2208 = vmatpush1.bf16.msra.mxu0 %v1412
    %2209 = vmatprep.subr.bf16.mxu0 %v1421
    %2210 = vmatpush1.bf16.msra.mxu0 %v1420
    %2211 = vmatprep.subr.bf16.mxu0 %v1429
    %2212 = vmatpush1.bf16.msra.mxu0 %v1428
    %2213 = vmatprep.subr.bf16.mxu0 %v1437
    %2214 = vmatpush1.bf16.msra.mxu0 %v1436
    %2215 = vmatprep.mubr.bf16.mxu0 %v416
    %2216 = vmatmul.mubr.bf16.gmra.mrb[0].mxu0 %v415
    %v2217 = vpop.f32.mrb[0].mxu0
    %v2218 = vadd.f32 %v378, %v2217
    %v2219 = vpop.f32.mrb[0].mxu0
    %v2220 = vadd.f32 %v382, %v2219
    %v2221 = vpop.f32.mrb[0].mxu0
    %v2222 = vadd.f32 %v378, %v2221
    %v2223 = vpop.f32.mrb[0].mxu0
    %v2224 = vadd.f32 %v382, %v2223
    %2225 = vdwg.mxu0
    %2226 = vmatprep.subr.bf16.mxu0 %v1445
    %2227 = vmatpush1.bf16.msra.mxu0 %v1444
    %2228 = vmatprep.subr.bf16.mxu0 %v1453
    %2229 = vmatpush1.bf16.msra.mxu0 %v1452
    %2230 = vmatprep.subr.bf16.mxu0 %v1461
    %2231 = vmatpush1.bf16.msra.mxu0 %v1460
    %2232 = vmatprep.subr.bf16.mxu0 %v1469
    %2233 = vmatpush1.bf16.msra.mxu0 %v1468
    %2234 = vmatprep.subr.bf16.mxu0 %v1477
    %2235 = vmatpush1.bf16.msra.mxu0 %v1476
    %2236 = vmatprep.subr.bf16.mxu0 %v1485
    %2237 = vmatpush1.bf16.msra.mxu0 %v1484
    %2238 = vmatprep.subr.bf16.mxu0 %v1493
    %2239 = vmatpush1.bf16.msra.mxu0 %v1492
    %2240 = vmatprep.subr.bf16.mxu0 %v1501
    %2241 = vmatpush1.bf16.msra.mxu0 %v1500
    %2242 = vmatprep.subr.bf16.mxu0 %v1509
    %2243 = vmatpush1.bf16.msra.mxu0 %v1508
    %2244 = vmatprep.subr.bf16.mxu0 %v1517
    %2245 = vmatpush1.bf16.msra.mxu0 %v1516
    %2246 = vmatprep.subr.bf16.mxu0 %v1525
    %2247 = vmatpush1.bf16.msra.mxu0 %v1524
    %2248 = vmatprep.subr.bf16.mxu0 %v1533
    %2249 = vmatpush1.bf16.msra.mxu0 %v1532
    %2250 = vmatprep.subr.bf16.mxu0 %v1541
    %2251 = vmatpush1.bf16.msra.mxu0 %v1540
    %2252 = vmatprep.subr.bf16.mxu0 %v1549
    %2253 = vmatpush1.bf16.msra.mxu0 %v1548
    %2254 = vmatprep.subr.bf16.mxu0 %v1557
    %2255 = vmatpush1.bf16.msra.mxu0 %v1556
    %2256 = vmatprep.subr.bf16.mxu0 %v1565
    %2257 = vmatpush1.bf16.msra.mxu0 %v1564
    %2258 = vmatprep.mubr.bf16.mxu0 %v418
    %2259 = vmatmul.mubr.bf16.gmra.mrb[0].mxu0 %v417
    %v2260 = vpop.f32.mrb[0].mxu0
    %v2261 = vadd.f32 %v2218, %v2260
    %v2262 = vpop.f32.mrb[0].mxu0
    %v2263 = vadd.f32 %v2220, %v2262
    %v2264 = vpop.f32.mrb[0].mxu0
    %v2265 = vadd.f32 %v2222, %v2264
    %v2266 = vpop.f32.mrb[0].mxu0
    %v2267 = vadd.f32 %v2224, %v2266
    %2268 = vdwg.mxu0
    %2269 = vmatprep.subr.bf16.mxu0 %v1573
    %2270 = vmatpush1.bf16.msra.mxu0 %v1572
    %2271 = vmatprep.subr.bf16.mxu0 %v1581
    %2272 = vmatpush1.bf16.msra.mxu0 %v1580
    %2273 = vmatprep.subr.bf16.mxu0 %v1589
    %2274 = vmatpush1.bf16.msra.mxu0 %v1588
    %2275 = vmatprep.subr.bf16.mxu0 %v1597
    %2276 = vmatpush1.bf16.msra.mxu0 %v1596
    %2277 = vmatprep.subr.bf16.mxu0 %v1917
    %2278 = vmatpush1.bf16.msra.mxu0 %v1914
    %2279 = vmatprep.subr.bf16.mxu0 0
    %2280 = vmatpush1.bf16.msra.mxu0 0
    %2281 = vmatprep.subr.bf16.mxu0 0
    %2282 = vmatpush1.bf16.msra.mxu0 0
    %2283 = vmatprep.subr.bf16.mxu0 0
    %2284 = vmatpush1.bf16.msra.mxu0 0
    %2285 = vmatprep.subr.bf16.mxu0 0
    %2286 = vmatpush1.bf16.msra.mxu0 0
    %2287 = vmatprep.subr.bf16.mxu0 0
    %2288 = vmatpush1.bf16.msra.mxu0 0
    %2289 = vmatprep.subr.bf16.mxu0 0
    %2290 = vmatpush1.bf16.msra.mxu0 0
    %2291 = vmatprep.subr.bf16.mxu0 0
    %2292 = vmatpush1.bf16.msra.mxu0 0
    %2293 = vmatprep.subr.bf16.mxu0 0
    %2294 = vmatpush1.bf16.msra.mxu0 0
    %2295 = vmatprep.subr.bf16.mxu0 0
    %2296 = vmatpush1.bf16.msra.mxu0 0
    %2297 = vmatprep.subr.bf16.mxu0 0
    %2298 = vmatpush1.bf16.msra.mxu0 0
    %2299 = vmatprep.subr.bf16.mxu0 0
    %2300 = vmatpush1.bf16.msra.mxu0 0
    %2301 = vmatprep.mubr.bf16.mxu0 0
    %2302 = vmatmul.mubr.bf16.gmra.mrb[0].mxu0 %v1898
    %v2303 = vpop.f32.mrb[0].mxu0
    %v2304 = vadd.f32 %v2261, %v2303
    %v2305 = vpop.f32.mrb[0].mxu0
    %v2306 = vadd.f32 %v2263, %v2305
    %v2307 = vpop.f32.mrb[0].mxu0
    %v2308 = vadd.f32 %v2265, %v2307
    %v2309 = vpop.f32.mrb[0].mxu0
    %v2310 = vadd.f32 %v2267, %v2309
    %2311 = vdwg.mxu0
    %2312 = vmatprep.subr.bf16.mxu0 %v1319
    %2313 = vmatpush1.bf16.msra.mxu0 %v1318
    %2314 = vmatprep.subr.bf16.mxu0 %v1327
    %2315 = vmatpush1.bf16.msra.mxu0 %v1326
    %2316 = vmatprep.subr.bf16.mxu0 %v1335
    %2317 = vmatpush1.bf16.msra.mxu0 %v1334
    %2318 = vmatprep.subr.bf16.mxu0 %v1343
    %2319 = vmatpush1.bf16.msra.mxu0 %v1342
    %2320 = vmatprep.subr.bf16.mxu0 %v1351
    %2321 = vmatpush1.bf16.msra.mxu0 %v1350
    %2322 = vmatprep.subr.bf16.mxu0 %v1359
    %2323 = vmatpush1.bf16.msra.mxu0 %v1358
    %2324 = vmatprep.subr.bf16.mxu0 %v1367
    %2325 = vmatpush1.bf16.msra.mxu0 %v1366
    %2326 = vmatprep.subr.bf16.mxu0 %v1375
    %2327 = vmatpush1.bf16.msra.mxu0 %v1374
    %2328 = vmatprep.subr.bf16.mxu0 %v1383
    %2329 = vmatpush1.bf16.msra.mxu0 %v1382
    %2330 = vmatprep.subr.bf16.mxu0 %v1391
    %2331 = vmatpush1.bf16.msra.mxu0 %v1390
    %2332 = vmatprep.subr.bf16.mxu0 %v1399
    %2333 = vmatpush1.bf16.msra.mxu0 %v1398
    %2334 = vmatprep.subr.bf16.mxu0 %v1407
    %2335 = vmatpush1.bf16.msra.mxu0 %v1406
    %2336 = vmatprep.subr.bf16.mxu0 %v1415
    %2337 = vmatpush1.bf16.msra.mxu0 %v1414
    %2338 = vmatprep.subr.bf16.mxu0 %v1423
    %2339 = vmatpush1.bf16.msra.mxu0 %v1422
    %2340 = vmatprep.subr.bf16.mxu0 %v1431
    %2341 = vmatpush1.bf16.msra.mxu0 %v1430
    %2342 = vmatprep.subr.bf16.mxu0 %v1439
    %2343 = vmatpush1.bf16.msra.mxu0 %v1438
    %2344 = vmatprep.mubr.bf16.mxu0 %v416
    %2345 = vmatmul.mubr.bf16.gmra.mrb[0].mxu0 %v415
    %v2346 = vpop.f32.mrb[0].mxu0
    %v2347 = vadd.f32 %v386, %v2346
    %v2348 = vpop.f32.mrb[0].mxu0
    %v2349 = vadd.f32 %v390, %v2348
    %v2350 = vpop.f32.mrb[0].mxu0
    %v2351 = vadd.f32 %v386, %v2350
    %v2352 = vpop.f32.mrb[0].mxu0
    %v2353 = vadd.f32 %v390, %v2352
    %2354 = vdwg.mxu0
    %2355 = vmatprep.subr.bf16.mxu0 %v1447
    %2356 = vmatpush1.bf16.msra.mxu0 %v1446
    %2357 = vmatprep.subr.bf16.mxu0 %v1455
    %2358 = vmatpush1.bf16.msra.mxu0 %v1454
    %2359 = vmatprep.subr.bf16.mxu0 %v1463
    %2360 = vmatpush1.bf16.msra.mxu0 %v1462
    %2361 = vmatprep.subr.bf16.mxu0 %v1471
    %2362 = vmatpush1.bf16.msra.mxu0 %v1470
    %2363 = vmatprep.subr.bf16.mxu0 %v1479
    %2364 = vmatpush1.bf16.msra.mxu0 %v1478
    %2365 = vmatprep.subr.bf16.mxu0 %v1487
    %2366 = vmatpush1.bf16.msra.mxu0 %v1486
    %2367 = vmatprep.subr.bf16.mxu0 %v1495
    %2368 = vmatpush1.bf16.msra.mxu0 %v1494
    %2369 = vmatprep.subr.bf16.mxu0 %v1503
    %2370 = vmatpush1.bf16.msra.mxu0 %v1502
    %2371 = vmatprep.subr.bf16.mxu0 %v1511
    %2372 = vmatpush1.bf16.msra.mxu0 %v1510
    %2373 = vmatprep.subr.bf16.mxu0 %v1519
    %2374 = vmatpush1.bf16.msra.mxu0 %v1518
    %2375 = vmatprep.subr.bf16.mxu0 %v1527
    %2376 = vmatpush1.bf16.msra.mxu0 %v1526
    %2377 = vmatprep.subr.bf16.mxu0 %v1535
    %2378 = vmatpush1.bf16.msra.mxu0 %v1534
    %2379 = vmatprep.subr.bf16.mxu0 %v1543
    %2380 = vmatpush1.bf16.msra.mxu0 %v1542
    %2381 = vmatprep.subr.bf16.mxu0 %v1551
    %2382 = vmatpush1.bf16.msra.mxu0 %v1550
    %2383 = vmatprep.subr.bf16.mxu0 %v1559
    %2384 = vmatpush1.bf16.msra.mxu0 %v1558
    %2385 = vmatprep.subr.bf16.mxu0 %v1567
    %2386 = vmatpush1.bf16.msra.mxu0 %v1566
    %2387 = vmatprep.mubr.bf16.mxu0 %v418
    %2388 = vmatmul.mubr.bf16.gmra.mrb[0].mxu0 %v417
    %v2389 = vpop.f32.mrb[0].mxu0
    %v2390 = vadd.f32 %v2347, %v2389
    %v2391 = vpop.f32.mrb[0].mxu0
    %v2392 = vadd.f32 %v2349, %v2391
    %v2393 = vpop.f32.mrb[0].mxu0
    %v2394 = vadd.f32 %v2351, %v2393
    %v2395 = vpop.f32.mrb[0].mxu0
    %v2396 = vadd.f32 %v2353, %v2395
    %2397 = vdwg.mxu0
    %2398 = vmatprep.subr.bf16.mxu0 %v1575
    %2399 = vmatpush1.bf16.msra.mxu0 %v1574
    %2400 = vmatprep.subr.bf16.mxu0 %v1583
    %2401 = vmatpush1.bf16.msra.mxu0 %v1582
    %2402 = vmatprep.subr.bf16.mxu0 %v1591
    %2403 = vmatpush1.bf16.msra.mxu0 %v1590
    %2404 = vmatprep.subr.bf16.mxu0 %v1599
    %2405 = vmatpush1.bf16.msra.mxu0 %v1598
    %2406 = vmatprep.subr.bf16.mxu0 %v1923
    %2407 = vmatpush1.bf16.msra.mxu0 %v1920
    %2408 = vmatprep.subr.bf16.mxu0 0
    %2409 = vmatpush1.bf16.msra.mxu0 0
    %2410 = vmatprep.subr.bf16.mxu0 0
    %2411 = vmatpush1.bf16.msra.mxu0 0
    %2412 = vmatprep.subr.bf16.mxu0 0
    %2413 = vmatpush1.bf16.msra.mxu0 0
    %2414 = vmatprep.subr.bf16.mxu0 0
    %2415 = vmatpush1.bf16.msra.mxu0 0
    %2416 = vmatprep.subr.bf16.mxu0 0
    %2417 = vmatpush1.bf16.msra.mxu0 0
    %2418 = vmatprep.subr.bf16.mxu0 0
    %2419 = vmatpush1.bf16.msra.mxu0 0
    %2420 = vmatprep.subr.bf16.mxu0 0
    %2421 = vmatpush1.bf16.msra.mxu0 0
    %2422 = vmatprep.subr.bf16.mxu0 0
    %2423 = vmatpush1.bf16.msra.mxu0 0
    %2424 = vmatprep.subr.bf16.mxu0 0
    %2425 = vmatpush1.bf16.msra.mxu0 0
    %2426 = vmatprep.subr.bf16.mxu0 0
    %2427 = vmatpush1.bf16.msra.mxu0 0
    %2428 = vmatprep.subr.bf16.mxu0 0
    %2429 = vmatpush1.bf16.msra.mxu0 0
    %2430 = vmatprep.mubr.bf16.mxu0 0
    %2431 = vmatmul.mubr.bf16.gmra.mrb[0].mxu0 %v1898
    %v2432 = vpop.f32.mrb[0].mxu0
    %v2433 = vadd.f32 %v2390, %v2432
    %v2434 = vpop.f32.mrb[0].mxu0
    %v2435 = vadd.f32 %v2392, %v2434
    %v2436 = vpop.f32.mrb[0].mxu0
    %v2437 = vadd.f32 %v2394, %v2436
    %v2438 = vpop.f32.mrb[0].mxu0
    %v2439 = vadd.f32 %v2396, %v2438
    %2440 = vdwg.mxu0
    %2441 = vst [vmem:[#allocation8] sm:$0xff] %v2046
    %2442 = vst [vmem:[#allocation8 + $0x8] sm:$0xff] %v2048
    %2443 = vst [vmem:[#allocation8 + $0x10] sm:$0xff] %v2175
    %2444 = vst [vmem:[#allocation8 + $0x18] sm:$0xff] %v2177
    %2445 = vst [vmem:[#allocation8 + $0x20] sm:$0xff] %v2304
    %2446 = vst [vmem:[#allocation8 + $0x28] sm:$0xff] %v2306
    %2447 = vst [vmem:[#allocation8 + $0x30] sm:$0xff] %v2433
    %2448 = vst [vmem:[#allocation8 + $0x38] sm:$0xff] %v2435
    %2449 = vst [vmem:[#allocation8 + $0x40] sm:$0xff] %v2050
    %2450 = vst [vmem:[#allocation8 + $0x48] sm:$0xff] %v2052
    %2451 = vst [vmem:[#allocation8 + $0x50] sm:$0xff] %v2179
    %2452 = vst [vmem:[#allocation8 + $0x58] sm:$0xff] %v2181
    %2453 = vst [vmem:[#allocation8 + $0x60] sm:$0xff] %v2308
    %2454 = vst [vmem:[#allocation8 + $0x68] sm:$0xff] %v2310
    %2455 = vst [vmem:[#allocation8 + $0x70] sm:$0xff] %v2437
    %2456 = vst [vmem:[#allocation8 + $0x78] sm:$0xff] %v2439
    // Predicated region
    $region26: #{tpu_custom_call.1} parent=1 // pred_check
      _
    $region27: #{tpu_custom_call.1} parent=1 // pred_check_branch
      %2458 = sbr.rel (0) target = $region29
    $region28: #{tpu_custom_call.1} parent=1 // pred_region
      %s2460 = ssub.s32 2048, 2048
      %2461 = vsyncadd [#allocation4], %s2460
      %s2462 = sshll.u32 [#allocation8], 4
      %s2463 = int_to_ptr.vmem [resolvable:$true] %s2462
      %2468 = dma.vmem_to_hbm [thread:$0]  %s2463, 2048, %s3, [#allocation4], 1024, 1024, 64
    $region29: #{tpu_custom_call.1} parent=1 // pred_fallthru
      _
    // Predicated region
    $region30: #{tpu_custom_call.1} parent=1 // pred_check
      _
    $region31: #{tpu_custom_call.1} parent=1 // pred_check_branch
      %2470 = sbr.rel (0) target = $region33
    $region32: #{tpu_custom_call.1} parent=1 // pred_region
      %2471 = dma.done [#allocation4], 2048
    $region33: #{tpu_custom_call.1} parent=1 // pred_fallthru
      _
    %2472 = vsyncpa [#allocation3], 1
    %2473 = vsyncpa [#allocation6], 1
    %2474 = vsyncpa [#allocation4], 1

</llo_original>
